<compile_context>
chip_gen: v5e
topology: v5e:2x2
jax: 0.10.0
libtpu: 0.0.40
codegen_flags: <defaults>
</compile_context>

<pallas_src>
import functools

import jax
import jax.numpy as jnp
from jax.experimental import pallas as pl
from jax.experimental.pallas import tpu as pltpu


def _fused_layers_kernel(x_ref,
                         ln1w_ref, ln1b_ref,
                         wq_t_ref, wk_t_ref, wv_t_ref, wp_t_ref, bp_ref,
                         ln2w_ref, ln2b_ref,
                         w1_t_ref, b1_ref, w2_t_ref, b2_ref,
                         o_ref,
                         *, num_heads: int, seq_len: int, eps: float = 1e-5):
    layer = pl.program_id(1)

    # The output block (constant index across the layer axis) is the VMEM layer
    # carry: load the input into it at layer 0, then read/modify/write in place.
    @pl.when(layer == 0)
    def _():
        o_ref[...] = x_ref[...]

    x = o_ref[...]                                   # (R, C) f32, R = TB * N
    r, c = x.shape
    n = seq_len
    tb = r // n
    hd = c // num_heads

    # ---- norm1 (LayerNorm over last dim, biased variance) -----------------
    mean = jnp.mean(x, axis=-1, keepdims=True)
    var = jnp.mean((x - mean) * (x - mean), axis=-1, keepdims=True)
    xn = (x - mean) * jax.lax.rsqrt(var + eps) * ln1w_ref[0] + ln1b_ref[0]
    xn_bf = xn.astype(jnp.bfloat16)

    # ---- multi-head self-attention (y = norm1(x); mask=None) --------------
    # Full-block projections (M = TB*N rows feeding the MXU).
    q = jnp.dot(xn_bf, wq_t_ref[0], preferred_element_type=jnp.float32)  # scale pre-folded
    k = jnp.dot(xn_bf, wk_t_ref[0], preferred_element_type=jnp.float32)
    v = jnp.dot(xn_bf, wv_t_ref[0], preferred_element_type=jnp.float32)

    # Attention core per batch element (static unroll over the batch block),
    # heads batched in a single 3-D einsum per step.
    ctx_rows = []
    for b in range(tb):
        rows = slice(b * n, (b + 1) * n)
        qh = q[rows].reshape(n, num_heads, hd).transpose(1, 0, 2).astype(jnp.bfloat16)
        kh = k[rows].reshape(n, num_heads, hd).transpose(1, 0, 2).astype(jnp.bfloat16)
        vh = v[rows].reshape(n, num_heads, hd).transpose(1, 0, 2).astype(jnp.bfloat16)

        s = jnp.einsum('hqd,hkd->hqk', qh, kh,
                       preferred_element_type=jnp.float32)        # (H, N, N) f32
        s = s - jnp.max(s, axis=-1, keepdims=True)
        p = jnp.exp(s)
        l = jnp.sum(p, axis=-1, keepdims=True)                    # (H, N, 1) f32
        ctx = jnp.einsum('hqk,hkd->hqd', p.astype(jnp.bfloat16), vh,
                         preferred_element_type=jnp.float32)      # (H, N, hd)
        # Deferred softmax normalization on the small (H, N, hd) tensor.
        ctx = ctx * pl.reciprocal(l, approx=True)
        ctx_rows.append(ctx.transpose(1, 0, 2).reshape(n, c))     # (N, C)

    ctx_all = ctx_rows[0] if tb == 1 else jnp.concatenate(ctx_rows, axis=0)

    attn = jnp.dot(ctx_all.astype(jnp.bfloat16), wp_t_ref[0],
                   preferred_element_type=jnp.float32) + bp_ref[0]

    x = x + attn                                                  # residual 1

    # ---- norm2 + MLP (fc1 -> relu -> fc2) ----------------------------------
    mean2 = jnp.mean(x, axis=-1, keepdims=True)
    var2 = jnp.mean((x - mean2) * (x - mean2), axis=-1, keepdims=True)
    xn2 = (x - mean2) * jax.lax.rsqrt(var2 + eps) * ln2w_ref[0] + ln2b_ref[0]

    h1 = jnp.dot(xn2.astype(jnp.bfloat16), w1_t_ref[0],
                 preferred_element_type=jnp.float32) + b1_ref[0]
    h1 = jnp.maximum(h1, 0.0)
    h2 = jnp.dot(h1.astype(jnp.bfloat16), w2_t_ref[0],
                 preferred_element_type=jnp.float32) + b2_ref[0]

    o_ref[...] = x + h2                                           # residual 2


_WEIGHT_ORDER = ("ln1_w", "ln1_b", "wq_t", "wk_t", "wv_t", "wp_t", "bp",
                 "ln2_w", "ln2_b", "w1_t", "b1", "w2_t", "b2")


def transformer_forward(x, params, num_heads, *, batch_block=None,
                        vmem_limit_bytes=None):
    """x: (B, N, C) f32.  batch_block=None folds the whole batch into one grid
    block (best on 1-TC chips); on v7x pass batch_block=B//2 so the 'parallel'
    batch axis shards across both TensorCores."""
    b, n, c = x.shape
    num_layers = params["wq_t"].shape[0]

    tb = b if batch_block is None else batch_block
    assert b % tb == 0, "batch_block must divide batch"
    num_blocks = b // tb
    rows = tb * n

    # Flatten (B, N, C) -> (B*N, C): all row-wise ops (LN / projections / MLP)
    # run on the full block, attention re-splits rows per batch element.
    x_flat = x.reshape(b * n, c)
    x_spec = pl.BlockSpec((rows, c), lambda bi, li: (bi, 0))

    def w_spec(arr):
        nd = arr.ndim
        return pl.BlockSpec((1,) + tuple(arr.shape[1:]),
                            lambda bi, li, _nd=nd: (li,) + (0,) * (_nd - 1))

    weight_args = [params[k] for k in _WEIGHT_ORDER]
    kernel = functools.partial(_fused_layers_kernel,
                               num_heads=num_heads, seq_len=n)

    # NOTE: per-layer resident set here is a few KiB, so default scoped VMEM is
    # fine on all generations.  For real C (>= ~700 on v5e, >= ~1.2k on v7x)
    # pass vmem_limit_bytes explicitly and/or tile the MLP hidden dim — the
    # double-buffered weight set is ~32*C^2 bytes bf16.
    cp_kwargs = dict(dimension_semantics=("parallel", "arbitrary"))
    if vmem_limit_bytes is not None:
        cp_kwargs["vmem_limit_bytes"] = vmem_limit_bytes

    out_flat = pl.pallas_call(
        kernel,
        out_shape=jax.ShapeDtypeStruct((b * n, c), jnp.float32),
        grid_spec=pltpu.PrefetchScalarGridSpec(
            num_scalar_prefetch=0,
            grid=(num_blocks, num_layers),     # layer axis innermost (carry)
            in_specs=[x_spec] + [w_spec(w) for w in weight_args],
            out_specs=x_spec,
        ),
        compiler_params=pltpu.CompilerParams(**cp_kwargs),
    )(x_flat, *weight_args)
    return out_flat.reshape(b, n, c)


def init_params(key, num_layers, dim_self, num_heads, mlp_ratio=2.0):
    """Per-layer weights stacked along a leading L axis.  PyTorch (out, in)
    Linear weights are pre-transposed so the kernel computes x @ W_T + b.
    When loading from PyTorch: wk = to_keys_values.weight[:C, :] and
    wv = to_keys_values.weight[C:, :] (the (2, H, hd) reshape puts K first)."""
    c = dim_self
    hdim = int(c * mlp_ratio)
    hd = c // num_heads
    scale = float(hd) ** (-0.5)
    L = num_layers
    std = 0.02
    keys = jax.random.split(key, 9)

    wq = jax.random.normal(keys[0], (L, c, c), jnp.float32) * std        # (out, in)
    wk = jax.random.normal(keys[1], (L, c, c), jnp.float32) * std
    wv = jax.random.normal(keys[2], (L, c, c), jnp.float32) * std
    wp = jax.random.normal(keys[3], (L, c, c), jnp.float32) * std
    bp = jax.random.normal(keys[4], (L, c), jnp.float32) * std
    w1 = jax.random.normal(keys[5], (L, hdim, c), jnp.float32) * std
    b1 = jax.random.normal(keys[6], (L, hdim), jnp.float32) * std
    w2 = jax.random.normal(keys[7], (L, c, hdim), jnp.float32) * std
    b2 = jax.random.normal(keys[8], (L, c), jnp.float32) * std

    return {
        "ln1_w": jnp.ones((L, 1, c), jnp.float32),
        "ln1_b": jnp.zeros((L, 1, c), jnp.float32),
        # (out, in) -> (in, out); softmax scale folded into Wq (bias=False).
        "wq_t": (jnp.swapaxes(wq, 1, 2) * scale).astype(jnp.bfloat16),   # (L, c, c)
        "wk_t": jnp.swapaxes(wk, 1, 2).astype(jnp.bfloat16),             # (L, c, c)
        "wv_t": jnp.swapaxes(wv, 1, 2).astype(jnp.bfloat16),             # (L, c, c)
        "wp_t": jnp.swapaxes(wp, 1, 2).astype(jnp.bfloat16),             # (L, c, c)
        "bp": bp.reshape(L, 1, c),
        "ln2_w": jnp.ones((L, 1, c), jnp.float32),
        "ln2_b": jnp.zeros((L, 1, c), jnp.float32),
        "w1_t": jnp.swapaxes(w1, 1, 2).astype(jnp.bfloat16),             # (L, c, hdim)
        "b1": b1.reshape(L, 1, hdim),
        "w2_t": jnp.swapaxes(w2, 1, 2).astype(jnp.bfloat16),             # (L, hdim, c)
        "b2": b2.reshape(L, 1, c),
    }


def _reference_forward(x, p, num_heads, eps=1e-5):
    """Pure-JAX f32 reference of the PyTorch forward (weights de-quantized)."""
    L = p["wq_t"].shape[0]

    def ln(v, w, b):
        m = v.mean(-1, keepdims=True)
        var = ((v - m) ** 2).mean(-1, keepdims=True)
        return (v - m) / jnp.sqrt(var + eps) * w + b

    for l in range(L):
        b_, n, c = x.shape
        hd = c // num_heads
        xn = ln(x, p["ln1_w"][l, 0], p["ln1_b"][l, 0])
        q = xn @ p["wq_t"][l].astype(jnp.float32)          # scale pre-folded
        k = xn @ p["wk_t"][l].astype(jnp.float32)
        v = xn @ p["wv_t"][l].astype(jnp.float32)
        qh = q.reshape(b_, n, num_heads, hd)
        kh = k.reshape(b_, n, num_heads, hd)
        vh = v.reshape(b_, n, num_heads, hd)
        att = jnp.einsum('bnhd,bmhd->bnmh', qh, kh)
        att = jax.nn.softmax(att, axis=2)
        ctx = jnp.einsum('bnmh,bmhd->bnhd', att, vh).reshape(b_, n, c)
        proj = ctx @ p["wp_t"][l].astype(jnp.float32) + p["bp"][l, 0]
        x = x + proj
        xn2 = ln(x, p["ln2_w"][l, 0], p["ln2_b"][l, 0])
        h1 = jnp.maximum(xn2 @ p["w1_t"][l].astype(jnp.float32) + p["b1"][l, 0], 0.0)
        h2 = h1 @ p["w2_t"][l].astype(jnp.float32) + p["b2"][l, 0]
        x = x + h2
    return x


if __name__ == "__main__":
    # Transformer(dim_self=32, num_heads=4, num_layers=2), enc_dec=False.
    B, N, C = 2, 8, 32
    NUM_HEADS = 4
    NUM_LAYERS = 2
    MLP_RATIO = 2.0

    root = jax.random.PRNGKey(0)
    kx, kp = jax.random.split(root)

    x = jax.random.normal(kx, (B, N, C), jnp.float32)
    params = init_params(kp, NUM_LAYERS, C, NUM_HEADS, MLP_RATIO)

    ref = jax.block_until_ready(_reference_forward(x, params, NUM_HEADS))

    # Whole batch folded into one grid block (grid = (1, num_layers)): weights
    # are fetched from HBM once per layer.  On v7x use batch_block=B//2.
    out = transformer_forward(x, params, NUM_HEADS)
    out = jax.block_until_ready(out)

    assert out.shape == (B, N, C)
    err = float(jnp.max(jnp.abs(out - ref)))
    assert err < 5e-2, f"max abs error vs reference too large: {err}"
    print("KERNEL_OK")
</pallas_src>

<mosaic_0001>
module attributes {stable_mosaic.version = 11 : i64} {
  func.func @_fused_layers_kernel(%arg0: i32, %arg1: i32, %arg2: memref<16x32xf32, #tpu.memory_space<vmem>>, %arg3: memref<1x1x32xf32, #tpu.memory_space<vmem>>, %arg4: memref<1x1x32xf32, #tpu.memory_space<vmem>>, %arg5: memref<1x32x32xbf16, #tpu.memory_space<vmem>>, %arg6: memref<1x32x32xbf16, #tpu.memory_space<vmem>>, %arg7: memref<1x32x32xbf16, #tpu.memory_space<vmem>>, %arg8: memref<1x32x32xbf16, #tpu.memory_space<vmem>>, %arg9: memref<1x1x32xf32, #tpu.memory_space<vmem>>, %arg10: memref<1x1x32xf32, #tpu.memory_space<vmem>>, %arg11: memref<1x1x32xf32, #tpu.memory_space<vmem>>, %arg12: memref<1x32x64xbf16, #tpu.memory_space<vmem>>, %arg13: memref<1x1x64xf32, #tpu.memory_space<vmem>>, %arg14: memref<1x64x32xbf16, #tpu.memory_space<vmem>>, %arg15: memref<1x1x32xf32, #tpu.memory_space<vmem>>, %arg16: memref<16x32xf32, #tpu.memory_space<vmem>>) attributes {dimension_semantics = [#tpu.dimension_semantics<parallel>, #tpu.dimension_semantics<arbitrary>], iteration_bounds = array<i64: 1, 2>, scalar_prefetch = 0 : i64, scratch_operands = 0 : i64, tpu.core_type = #tpu.core_type<tc>, window_params = [{transform_indices = @transform_0, window_bounds = array<i64: 16, 32>}, {transform_indices = @transform_1, window_bounds = array<i64: 1, 1, 32>}, {transform_indices = @transform_2, window_bounds = array<i64: 1, 1, 32>}, {transform_indices = @transform_3, window_bounds = array<i64: 1, 32, 32>}, {transform_indices = @transform_4, window_bounds = array<i64: 1, 32, 32>}, {transform_indices = @transform_5, window_bounds = array<i64: 1, 32, 32>}, {transform_indices = @transform_6, window_bounds = array<i64: 1, 32, 32>}, {transform_indices = @transform_7, window_bounds = array<i64: 1, 1, 32>}, {transform_indices = @transform_8, window_bounds = array<i64: 1, 1, 32>}, {transform_indices = @transform_9, window_bounds = array<i64: 1, 1, 32>}, {transform_indices = @transform_10, window_bounds = array<i64: 1, 32, 64>}, {transform_indices = @transform_11, window_bounds = array<i64: 1, 1, 64>}, {transform_indices = @transform_12, window_bounds = array<i64: 1, 64, 32>}, {transform_indices = @transform_13, window_bounds = array<i64: 1, 1, 32>}, {transform_indices = @transform_14, window_bounds = array<i64: 16, 32>}]} {
    %c0_i32 = arith.constant 0 : i32
    %0 = arith.cmpi eq, %arg1, %c0_i32 : i32
    %1 = arith.extui %0 : i1 to i32
    %c0_i32_0 = arith.constant 0 : i32
    %2 = arith.cmpi ne, %1, %c0_i32_0 : i32
    scf.if %2 {
      %c0_67 = arith.constant 0 : index
      %c0_68 = arith.constant 0 : index
      %154 = vector.load %arg2[%c0_67, %c0_68] : memref<16x32xf32, #tpu.memory_space<vmem>>, vector<16x32xf32>
      %c0_69 = arith.constant 0 : index
      %c0_70 = arith.constant 0 : index
      %155 = vector.load %arg16[%c0_69, %c0_70] : memref<16x32xf32, #tpu.memory_space<vmem>>, vector<16x32xf32>
      tpu.vector_store %arg16[%c0_69, %c0_70], %154 {strides = array<i32>} : memref<16x32xf32, #tpu.memory_space<vmem>>, vector<16x32xf32>,
    } else {
    }
    %c0 = arith.constant 0 : index
    %c0_1 = arith.constant 0 : index
    %3 = vector.load %arg16[%c0, %c0_1] : memref<16x32xf32, #tpu.memory_space<vmem>>, vector<16x32xf32>
    %cst = arith.constant dense<0.000000e+00> : vector<16xf32>
    %4 = vector.multi_reduction <add>, %3, %cst [1] : vector<16x32xf32> to vector<16xf32>
    %5 = vector.shape_cast %4 : vector<16xf32> to vector<16x1xf32>
    %cst_2 = arith.constant 3.200000e+01 : f32
    %6 = vector.broadcast %cst_2 : f32 to vector<16x1xf32>
    %7 = arith.divf %5, %6 : vector<16x1xf32>
    %8 = vector.broadcast %7 : vector<16x1xf32> to vector<16x32xf32>
    %9 = arith.subf %3, %8 : vector<16x32xf32>
    %10 = vector.broadcast %7 : vector<16x1xf32> to vector<16x32xf32>
    %11 = arith.subf %3, %10 : vector<16x32xf32>
    %12 = arith.mulf %9, %11 : vector<16x32xf32>
    %cst_3 = arith.constant dense<0.000000e+00> : vector<16xf32>
    %13 = vector.multi_reduction <add>, %12, %cst_3 [1] : vector<16x32xf32> to vector<16xf32>
    %14 = vector.shape_cast %13 : vector<16xf32> to vector<16x1xf32>
    %cst_4 = arith.constant 3.200000e+01 : f32
    %15 = vector.broadcast %cst_4 : f32 to vector<16x1xf32>
    %16 = arith.divf %14, %15 : vector<16x1xf32>
    %17 = vector.broadcast %7 : vector<16x1xf32> to vector<16x32xf32>
    %18 = arith.subf %3, %17 : vector<16x32xf32>
    %cst_5 = arith.constant 9.99999974E-6 : f32
    %19 = vector.broadcast %cst_5 : f32 to vector<16x1xf32>
    %20 = arith.addf %16, %19 : vector<16x1xf32>
    %21 = math.rsqrt %20 : vector<16x1xf32>
    %22 = vector.broadcast %21 : vector<16x1xf32> to vector<16x32xf32>
    %23 = arith.mulf %18, %22 : vector<16x32xf32>
    %c0_6 = arith.constant 0 : index
    %c0_7 = arith.constant 0 : index
    %c0_8 = arith.constant 0 : index
    %24 = vector.load %arg3[%c0_6, %c0_7, %c0_8] : memref<1x1x32xf32, #tpu.memory_space<vmem>>, vector<1x1x32xf32>
    %25 = vector.shape_cast %24 : vector<1x1x32xf32> to vector<1x32xf32>
    %26 = vector.broadcast %25 : vector<1x32xf32> to vector<16x32xf32>
    %27 = arith.mulf %23, %26 : vector<16x32xf32>
    %c0_9 = arith.constant 0 : index
    %c0_10 = arith.constant 0 : index
    %c0_11 = arith.constant 0 : index
    %28 = vector.load %arg4[%c0_9, %c0_10, %c0_11] : memref<1x1x32xf32, #tpu.memory_space<vmem>>, vector<1x1x32xf32>
    %29 = vector.shape_cast %28 : vector<1x1x32xf32> to vector<1x32xf32>
    %30 = vector.broadcast %29 : vector<1x32xf32> to vector<16x32xf32>
    %31 = arith.addf %27, %30 : vector<16x32xf32>
    %32 = arith.truncf %31 : vector<16x32xf32> to vector<16x32xbf16>
    %c0_12 = arith.constant 0 : index
    %c0_13 = arith.constant 0 : index
    %c0_14 = arith.constant 0 : index
    %33 = vector.load %arg5[%c0_12, %c0_13, %c0_14] : memref<1x32x32xbf16, #tpu.memory_space<vmem>>, vector<1x32x32xbf16>
    %34 = vector.shape_cast %33 : vector<1x32x32xbf16> to vector<32x32xbf16>
    %cst_15 = arith.constant dense<0.000000e+00> : vector<16x32xf32>
    %35 = tpu.matmul %32, %34, %cst_15 {dimension_numbers = #tpu.dot_dimension_numbers<[1], [0], [0], [1], [0, 0, 1, 1], [], []>} : vector<16x32xbf16>, vector<32x32xbf16>, vector<16x32xf32> -> vector<16x32xf32>
    %c0_16 = arith.constant 0 : index
    %c0_17 = arith.constant 0 : index
    %c0_18 = arith.constant 0 : index
    %36 = vector.load %arg6[%c0_16, %c0_17, %c0_18] : memref<1x32x32xbf16, #tpu.memory_space<vmem>>, vector<1x32x32xbf16>
    %37 = vector.shape_cast %36 : vector<1x32x32xbf16> to vector<32x32xbf16>
    %cst_19 = arith.constant dense<0.000000e+00> : vector<16x32xf32>
    %38 = tpu.matmul %32, %37, %cst_19 {dimension_numbers = #tpu.dot_dimension_numbers<[1], [0], [0], [1], [0, 0, 1, 1], [], []>} : vector<16x32xbf16>, vector<32x32xbf16>, vector<16x32xf32> -> vector<16x32xf32>
    %c0_20 = arith.constant 0 : index
    %c0_21 = arith.constant 0 : index
    %c0_22 = arith.constant 0 : index
    %39 = vector.load %arg7[%c0_20, %c0_21, %c0_22] : memref<1x32x32xbf16, #tpu.memory_space<vmem>>, vector<1x32x32xbf16>
    %40 = vector.shape_cast %39 : vector<1x32x32xbf16> to vector<32x32xbf16>
    %cst_23 = arith.constant dense<0.000000e+00> : vector<16x32xf32>
    %41 = tpu.matmul %32, %40, %cst_23 {dimension_numbers = #tpu.dot_dimension_numbers<[1], [0], [0], [1], [0, 0, 1, 1], [], []>} : vector<16x32xbf16>, vector<32x32xbf16>, vector<16x32xf32> -> vector<16x32xf32>
    %42 = vector.extract_strided_slice %35 {offsets = [0, 0], sizes = [8, 32], strides = [1, 1]} : vector<16x32xf32> to vector<8x32xf32>
    %43 = vector.shape_cast %42 : vector<8x32xf32> to vector<8x4x8xf32>
    %44 = tpu.transpose %43, [1, 0, 2] : vector<8x4x8xf32> -> vector<4x8x8xf32>
    %45 = arith.truncf %44 : vector<4x8x8xf32> to vector<4x8x8xbf16>
    %46 = vector.extract_strided_slice %38 {offsets = [0, 0], sizes = [8, 32], strides = [1, 1]} : vector<16x32xf32> to vector<8x32xf32>
    %47 = vector.shape_cast %46 : vector<8x32xf32> to vector<8x4x8xf32>
    %48 = tpu.transpose %47, [1, 0, 2] : vector<8x4x8xf32> -> vector<4x8x8xf32>
    %49 = arith.truncf %48 : vector<4x8x8xf32> to vector<4x8x8xbf16>
    %50 = vector.extract_strided_slice %41 {offsets = [0, 0], sizes = [8, 32], strides = [1, 1]} : vector<16x32xf32> to vector<8x32xf32>
    %51 = vector.shape_cast %50 : vector<8x32xf32> to vector<8x4x8xf32>
    %52 = tpu.transpose %51, [1, 0, 2] : vector<8x4x8xf32> -> vector<4x8x8xf32>
    %53 = arith.truncf %52 : vector<4x8x8xf32> to vector<4x8x8xbf16>
    "tpu.trace_start"() <{level = 10 : i32, message = "hqd,hkd->hqk"}> : () -> ()
    %cst_24 = arith.constant dense<0.000000e+00> : vector<4x8x8xf32>
    %54 = tpu.matmul %45, %49, %cst_24 {dimension_numbers = #tpu.dot_dimension_numbers<[2], [2], [1], [1], [0, 0, 0, 1, 1, 1], [0], [0]>} : vector<4x8x8xbf16>, vector<4x8x8xbf16>, vector<4x8x8xf32> -> vector<4x8x8xf32>
    "tpu.trace_stop"() : () -> ()
    %cst_25 = arith.constant dense<0xFF800000> : vector<4x8xf32>
    %55 = vector.multi_reduction <maximumf>, %54, %cst_25 [2] : vector<4x8x8xf32> to vector<4x8xf32>
    %56 = vector.shape_cast %55 : vector<4x8xf32> to vector<4x8x1xf32>
    %57 = vector.broadcast %56 : vector<4x8x1xf32> to vector<4x8x8xf32>
    %58 = arith.subf %54, %57 : vector<4x8x8xf32>
    %59 = math.exp %58 : vector<4x8x8xf32>
    %cst_26 = arith.constant dense<0.000000e+00> : vector<4x8xf32>
    %60 = vector.multi_reduction <add>, %59, %cst_26 [2] : vector<4x8x8xf32> to vector<4x8xf32>
    %61 = vector.shape_cast %60 : vector<4x8xf32> to vector<4x8x1xf32>
    %62 = arith.truncf %59 : vector<4x8x8xf32> to vector<4x8x8xbf16>
    "tpu.trace_start"() <{level = 10 : i32, message = "hqk,hkd->hqd"}> : () -> ()
    %cst_27 = arith.constant dense<0.000000e+00> : vector<4x8x8xf32>
    %63 = tpu.matmul %62, %53, %cst_27 {dimension_numbers = #tpu.dot_dimension_numbers<[2], [1], [1], [2], [0, 0, 0, 1, 1, 2], [0], [0]>} : vector<4x8x8xbf16>, vector<4x8x8xbf16>, vector<4x8x8xf32> -> vector<4x8x8xf32>
    "tpu.trace_stop"() : () -> ()
    %64 = tpu.reciprocal %61 {approx = true} : vector<4x8x1xf32> -> vector<4x8x1xf32>
    %65 = vector.broadcast %64 : vector<4x8x1xf32> to vector<4x8x8xf32>
    %66 = arith.mulf %63, %65 : vector<4x8x8xf32>
    %67 = tpu.transpose %66, [1, 0, 2] : vector<4x8x8xf32> -> vector<8x4x8xf32>
    %68 = vector.shape_cast %67 : vector<8x4x8xf32> to vector<8x32xf32>
    %69 = vector.extract_strided_slice %35 {offsets = [8, 0], sizes = [8, 32], strides = [1, 1]} : vector<16x32xf32> to vector<8x32xf32>
    %70 = vector.shape_cast %69 : vector<8x32xf32> to vector<8x4x8xf32>
    %71 = tpu.transpose %70, [1, 0, 2] : vector<8x4x8xf32> -> vector<4x8x8xf32>
    %72 = arith.truncf %71 : vector<4x8x8xf32> to vector<4x8x8xbf16>
    %73 = vector.extract_strided_slice %38 {offsets = [8, 0], sizes = [8, 32], strides = [1, 1]} : vector<16x32xf32> to vector<8x32xf32>
    %74 = vector.shape_cast %73 : vector<8x32xf32> to vector<8x4x8xf32>
    %75 = tpu.transpose %74, [1, 0, 2] : vector<8x4x8xf32> -> vector<4x8x8xf32>
    %76 = arith.truncf %75 : vector<4x8x8xf32> to vector<4x8x8xbf16>
    %77 = vector.extract_strided_slice %41 {offsets = [8, 0], sizes = [8, 32], strides = [1, 1]} : vector<16x32xf32> to vector<8x32xf32>
    %78 = vector.shape_cast %77 : vector<8x32xf32> to vector<8x4x8xf32>
    %79 = tpu.transpose %78, [1, 0, 2] : vector<8x4x8xf32> -> vector<4x8x8xf32>
    %80 = arith.truncf %79 : vector<4x8x8xf32> to vector<4x8x8xbf16>
    "tpu.trace_start"() <{level = 10 : i32, message = "hqd,hkd->hqk"}> : () -> ()
    %cst_28 = arith.constant dense<0.000000e+00> : vector<4x8x8xf32>
    %81 = tpu.matmul %72, %76, %cst_28 {dimension_numbers = #tpu.dot_dimension_numbers<[2], [2], [1], [1], [0, 0, 0, 1, 1, 1], [0], [0]>} : vector<4x8x8xbf16>, vector<4x8x8xbf16>, vector<4x8x8xf32> -> vector<4x8x8xf32>
    "tpu.trace_stop"() : () -> ()
    %cst_29 = arith.constant dense<0xFF800000> : vector<4x8xf32>
    %82 = vector.multi_reduction <maximumf>, %81, %cst_29 [2] : vector<4x8x8xf32> to vector<4x8xf32>
    %83 = vector.shape_cast %82 : vector<4x8xf32> to vector<4x8x1xf32>
    %84 = vector.broadcast %83 : vector<4x8x1xf32> to vector<4x8x8xf32>
    %85 = arith.subf %81, %84 : vector<4x8x8xf32>
    %86 = math.exp %85 : vector<4x8x8xf32>
    %cst_30 = arith.constant dense<0.000000e+00> : vector<4x8xf32>
    %87 = vector.multi_reduction <add>, %86, %cst_30 [2] : vector<4x8x8xf32> to vector<4x8xf32>
    %88 = vector.shape_cast %87 : vector<4x8xf32> to vector<4x8x1xf32>
    %89 = arith.truncf %86 : vector<4x8x8xf32> to vector<4x8x8xbf16>
    "tpu.trace_start"() <{level = 10 : i32, message = "hqk,hkd->hqd"}> : () -> ()
    %cst_31 = arith.constant dense<0.000000e+00> : vector<4x8x8xf32>
    %90 = tpu.matmul %89, %80, %cst_31 {dimension_numbers = #tpu.dot_dimension_numbers<[2], [1], [1], [2], [0, 0, 0, 1, 1, 2], [0], [0]>} : vector<4x8x8xbf16>, vector<4x8x8xbf16>, vector<4x8x8xf32> -> vector<4x8x8xf32>
    "tpu.trace_stop"() : () -> ()
    %91 = tpu.reciprocal %88 {approx = true} : vector<4x8x1xf32> -> vector<4x8x1xf32>
    %92 = vector.broadcast %91 : vector<4x8x1xf32> to vector<4x8x8xf32>
    %93 = arith.mulf %90, %92 : vector<4x8x8xf32>
    %94 = tpu.transpose %93, [1, 0, 2] : vector<4x8x8xf32> -> vector<8x4x8xf32>
    %95 = vector.shape_cast %94 : vector<8x4x8xf32> to vector<8x32xf32>
    %96 = tpu.concatenate %68, %95 in 0 : vector<8x32xf32>, vector<8x32xf32> -> vector<16x32xf32>
    %97 = arith.truncf %96 : vector<16x32xf32> to vector<16x32xbf16>
    %c0_32 = arith.constant 0 : index
    %c0_33 = arith.constant 0 : index
    %c0_34 = arith.constant 0 : index
    %98 = vector.load %arg8[%c0_32, %c0_33, %c0_34] : memref<1x32x32xbf16, #tpu.memory_space<vmem>>, vector<1x32x32xbf16>
    %99 = vector.shape_cast %98 : vector<1x32x32xbf16> to vector<32x32xbf16>
    %cst_35 = arith.constant dense<0.000000e+00> : vector<16x32xf32>
    %100 = tpu.matmul %97, %99, %cst_35 {dimension_numbers = #tpu.dot_dimension_numbers<[1], [0], [0], [1], [0, 0, 1, 1], [], []>} : vector<16x32xbf16>, vector<32x32xbf16>, vector<16x32xf32> -> vector<16x32xf32>
    %c0_36 = arith.constant 0 : index
    %c0_37 = arith.constant 0 : index
    %c0_38 = arith.constant 0 : index
    %101 = vector.load %arg9[%c0_36, %c0_37, %c0_38] : memref<1x1x32xf32, #tpu.memory_space<vmem>>, vector<1x1x32xf32>
    %102 = vector.shape_cast %101 : vector<1x1x32xf32> to vector<1x32xf32>
    %103 = vector.broadcast %102 : vector<1x32xf32> to vector<16x32xf32>
    %104 = arith.addf %100, %103 : vector<16x32xf32>
    %105 = arith.addf %3, %104 : vector<16x32xf32>
    %cst_39 = arith.constant dense<0.000000e+00> : vector<16xf32>
    %106 = vector.multi_reduction <add>, %105, %cst_39 [1] : vector<16x32xf32> to vector<16xf32>
    %107 = vector.shape_cast %106 : vector<16xf32> to vector<16x1xf32>
    %cst_40 = arith.constant 3.200000e+01 : f32
    %108 = vector.broadcast %cst_40 : f32 to vector<16x1xf32>
    %109 = arith.divf %107, %108 : vector<16x1xf32>
    %110 = vector.broadcast %109 : vector<16x1xf32> to vector<16x32xf32>
    %111 = arith.subf %105, %110 : vector<16x32xf32>
    %112 = vector.broadcast %109 : vector<16x1xf32> to vector<16x32xf32>
    %113 = arith.subf %105, %112 : vector<16x32xf32>
    %114 = arith.mulf %111, %113 : vector<16x32xf32>
    %cst_41 = arith.constant dense<0.000000e+00> : vector<16xf32>
    %115 = vector.multi_reduction <add>, %114, %cst_41 [1] : vector<16x32xf32> to vector<16xf32>
    %116 = vector.shape_cast %115 : vector<16xf32> to vector<16x1xf32>
    %cst_42 = arith.constant 3.200000e+01 : f32
    %117 = vector.broadcast %cst_42 : f32 to vector<16x1xf32>
    %118 = arith.divf %116, %117 : vector<16x1xf32>
    %119 = vector.broadcast %109 : vector<16x1xf32> to vector<16x32xf32>
    %120 = arith.subf %105, %119 : vector<16x32xf32>
    %cst_43 = arith.constant 9.99999974E-6 : f32
    %121 = vector.broadcast %cst_43 : f32 to vector<16x1xf32>
    %122 = arith.addf %118, %121 : vector<16x1xf32>
    %123 = math.rsqrt %122 : vector<16x1xf32>
    %124 = vector.broadcast %123 : vector<16x1xf32> to vector<16x32xf32>
    %125 = arith.mulf %120, %124 : vector<16x32xf32>
    %c0_44 = arith.constant 0 : index
    %c0_45 = arith.constant 0 : index
    %c0_46 = arith.constant 0 : index
    %126 = vector.load %arg10[%c0_44, %c0_45, %c0_46] : memref<1x1x32xf32, #tpu.memory_space<vmem>>, vector<1x1x32xf32>
    %127 = vector.shape_cast %126 : vector<1x1x32xf32> to vector<1x32xf32>
    %128 = vector.broadcast %127 : vector<1x32xf32> to vector<16x32xf32>
    %129 = arith.mulf %125, %128 : vector<16x32xf32>
    %c0_47 = arith.constant 0 : index
    %c0_48 = arith.constant 0 : index
    %c0_49 = arith.constant 0 : index
    %130 = vector.load %arg11[%c0_47, %c0_48, %c0_49] : memref<1x1x32xf32, #tpu.memory_space<vmem>>, vector<1x1x32xf32>
    %131 = vector.shape_cast %130 : vector<1x1x32xf32> to vector<1x32xf32>
    %132 = vector.broadcast %131 : vector<1x32xf32> to vector<16x32xf32>
    %133 = arith.addf %129, %132 : vector<16x32xf32>
    %134 = arith.truncf %133 : vector<16x32xf32> to vector<16x32xbf16>
    %c0_50 = arith.constant 0 : index
    %c0_51 = arith.constant 0 : index
    %c0_52 = arith.constant 0 : index
    %135 = vector.load %arg12[%c0_50, %c0_51, %c0_52] : memref<1x32x64xbf16, #tpu.memory_space<vmem>>, vector<1x32x64xbf16>
    %136 = vector.shape_cast %135 : vector<1x32x64xbf16> to vector<32x64xbf16>
    %cst_53 = arith.constant dense<0.000000e+00> : vector<16x64xf32>
    %137 = tpu.matmul %134, %136, %cst_53 {dimension_numbers = #tpu.dot_dimension_numbers<[1], [0], [0], [1], [0, 0, 1, 1], [], []>} : vector<16x32xbf16>, vector<32x64xbf16>, vector<16x64xf32> -> vector<16x64xf32>
    %c0_54 = arith.constant 0 : index
    %c0_55 = arith.constant 0 : index
    %c0_56 = arith.constant 0 : index
    %138 = vector.load %arg13[%c0_54, %c0_55, %c0_56] : memref<1x1x64xf32, #tpu.memory_space<vmem>>, vector<1x1x64xf32>
    %139 = vector.shape_cast %138 : vector<1x1x64xf32> to vector<1x64xf32>
    %140 = vector.broadcast %139 : vector<1x64xf32> to vector<16x64xf32>
    %141 = arith.addf %137, %140 : vector<16x64xf32>
    %cst_57 = arith.constant 0.000000e+00 : f32
    %142 = vector.broadcast %cst_57 : f32 to vector<16x64xf32>
    %143 = arith.maximumf %141, %142 : vector<16x64xf32>
    %144 = arith.truncf %143 : vector<16x64xf32> to vector<16x64xbf16>
    %c0_58 = arith.constant 0 : index
    %c0_59 = arith.constant 0 : index
    %c0_60 = arith.constant 0 : index
    %145 = vector.load %arg14[%c0_58, %c0_59, %c0_60] : memref<1x64x32xbf16, #tpu.memory_space<vmem>>, vector<1x64x32xbf16>
    %146 = vector.shape_cast %145 : vector<1x64x32xbf16> to vector<64x32xbf16>
    %cst_61 = arith.constant dense<0.000000e+00> : vector<16x32xf32>
    %147 = tpu.matmul %144, %146, %cst_61 {dimension_numbers = #tpu.dot_dimension_numbers<[1], [0], [0], [1], [0, 0, 1, 1], [], []>} : vector<16x64xbf16>, vector<64x32xbf16>, vector<16x32xf32> -> vector<16x32xf32>
    %c0_62 = arith.constant 0 : index
    %c0_63 = arith.constant 0 : index
    %c0_64 = arith.constant 0 : index
    %148 = vector.load %arg15[%c0_62, %c0_63, %c0_64] : memref<1x1x32xf32, #tpu.memory_space<vmem>>, vector<1x1x32xf32>
    %149 = vector.shape_cast %148 : vector<1x1x32xf32> to vector<1x32xf32>
    %150 = vector.broadcast %149 : vector<1x32xf32> to vector<16x32xf32>
    %151 = arith.addf %147, %150 : vector<16x32xf32>
    %152 = arith.addf %105, %151 : vector<16x32xf32>
    %c0_65 = arith.constant 0 : index
    %c0_66 = arith.constant 0 : index
    %153 = vector.load %arg16[%c0_65, %c0_66] : memref<16x32xf32, #tpu.memory_space<vmem>>, vector<16x32xf32>
    tpu.vector_store %arg16[%c0_65, %c0_66], %152 {strides = array<i32>} : memref<16x32xf32, #tpu.memory_space<vmem>>, vector<16x32xf32>,
    return
  }
  func.func @transform_0(%arg0: i32, %arg1: i32) -> (i32, i32) {
    %c0_i32 = arith.constant 0 : i32
    %c0_i32_0 = arith.constant 0 : i32
    return %arg0, %c0_i32 : i32, i32
  }
  func.func @transform_1(%arg0: i32, %arg1: i32) -> (i32, i32, i32) {
    %c0_i32 = arith.constant 0 : i32
    %c0_i32_0 = arith.constant 0 : i32
    %c0_i32_1 = arith.constant 0 : i32
    return %arg1, %c0_i32, %c0_i32_0 : i32, i32, i32
  }
  func.func @transform_2(%arg0: i32, %arg1: i32) -> (i32, i32, i32) {
    %c0_i32 = arith.constant 0 : i32
    %c0_i32_0 = arith.constant 0 : i32
    %c0_i32_1 = arith.constant 0 : i32
    return %arg1, %c0_i32, %c0_i32_0 : i32, i32, i32
  }
  func.func @transform_3(%arg0: i32, %arg1: i32) -> (i32, i32, i32) {
    %c0_i32 = arith.constant 0 : i32
    %c0_i32_0 = arith.constant 0 : i32
    %c0_i32_1 = arith.constant 0 : i32
    return %arg1, %c0_i32, %c0_i32_0 : i32, i32, i32
  }
  func.func @transform_4(%arg0: i32, %arg1: i32) -> (i32, i32, i32) {
    %c0_i32 = arith.constant 0 : i32
    %c0_i32_0 = arith.constant 0 : i32
    %c0_i32_1 = arith.constant 0 : i32
    return %arg1, %c0_i32, %c0_i32_0 : i32, i32, i32
  }
  func.func @transform_5(%arg0: i32, %arg1: i32) -> (i32, i32, i32) {
    %c0_i32 = arith.constant 0 : i32
    %c0_i32_0 = arith.constant 0 : i32
    %c0_i32_1 = arith.constant 0 : i32
    return %arg1, %c0_i32, %c0_i32_0 : i32, i32, i32
  }
  func.func @transform_6(%arg0: i32, %arg1: i32) -> (i32, i32, i32) {
    %c0_i32 = arith.constant 0 : i32
    %c0_i32_0 = arith.constant 0 : i32
    %c0_i32_1 = arith.constant 0 : i32
    return %arg1, %c0_i32, %c0_i32_0 : i32, i32, i32
  }
  func.func @transform_7(%arg0: i32, %arg1: i32) -> (i32, i32, i32) {
    %c0_i32 = arith.constant 0 : i32
    %c0_i32_0 = arith.constant 0 : i32
    %c0_i32_1 = arith.constant 0 : i32
    return %arg1, %c0_i32, %c0_i32_0 : i32, i32, i32
  }
  func.func @transform_8(%arg0: i32, %arg1: i32) -> (i32, i32, i32) {
    %c0_i32 = arith.constant 0 : i32
    %c0_i32_0 = arith.constant 0 : i32
    %c0_i32_1 = arith.constant 0 : i32
    return %arg1, %c0_i32, %c0_i32_0 : i32, i32, i32
  }
  func.func @transform_9(%arg0: i32, %arg1: i32) -> (i32, i32, i32) {
    %c0_i32 = arith.constant 0 : i32
    %c0_i32_0 = arith.constant 0 : i32
    %c0_i32_1 = arith.constant 0 : i32
    return %arg1, %c0_i32, %c0_i32_0 : i32, i32, i32
  }
  func.func @transform_10(%arg0: i32, %arg1: i32) -> (i32, i32, i32) {
    %c0_i32 = arith.constant 0 : i32
    %c0_i32_0 = arith.constant 0 : i32
    %c0_i32_1 = arith.constant 0 : i32
    return %arg1, %c0_i32, %c0_i32_0 : i32, i32, i32
  }
  func.func @transform_11(%arg0: i32, %arg1: i32) -> (i32, i32, i32) {
    %c0_i32 = arith.constant 0 : i32
    %c0_i32_0 = arith.constant 0 : i32
    %c0_i32_1 = arith.constant 0 : i32
    return %arg1, %c0_i32, %c0_i32_0 : i32, i32, i32
  }
  func.func @transform_12(%arg0: i32, %arg1: i32) -> (i32, i32, i32) {
    %c0_i32 = arith.constant 0 : i32
    %c0_i32_0 = arith.constant 0 : i32
    %c0_i32_1 = arith.constant 0 : i32
    return %arg1, %c0_i32, %c0_i32_0 : i32, i32, i32
  }
  func.func @transform_13(%arg0: i32, %arg1: i32) -> (i32, i32, i32) {
    %c0_i32 = arith.constant 0 : i32
    %c0_i32_0 = arith.constant 0 : i32
    %c0_i32_1 = arith.constant 0 : i32
    return %arg1, %c0_i32, %c0_i32_0 : i32, i32, i32
  }
  func.func @transform_14(%arg0: i32, %arg1: i32) -> (i32, i32) {
    %c0_i32 = arith.constant 0 : i32
    %c0_i32_0 = arith.constant 0 : i32
    return %arg0, %c0_i32 : i32, i32
  }
}

</mosaic_0001>

<llo_original>
// kernel: tpu_custom_call.1
$region0: #{tpu_custom_call.1}
  #allocation0 [shape = 'u32[]', space=smem, size = 0x4, offset = 0x4, fixed_abs, tag = 'smem constant byte address 0x4 - core index']
  #allocation1 [shape = 'u32[72,128]{1,0:T(1,128)}', space=vmem, size = 0x9000, scoped, tag = 'internal scratch']
  %s0 = inlined_call_operand.hbm [shape: f32[16,32], index: 0, kind: input, shape index: {}]
  %s1 = inlined_call_operand.hbm [shape: f32[2,1,32], index: 1, kind: input, shape index: {}]
  %s2 = inlined_call_operand.hbm [shape: f32[2,1,32], index: 2, kind: input, shape index: {}]
  %s3 = inlined_call_operand.vmem [shape: bf16[2,32,32], index: 3, kind: input, shape index: {}]
  %s4 = inlined_call_operand.vmem [shape: bf16[2,32,32], index: 4, kind: input, shape index: {}]
  %s5 = inlined_call_operand.vmem [shape: bf16[2,32,32], index: 5, kind: input, shape index: {}]
  %s6 = inlined_call_operand.hbm [shape: bf16[2,32,32], index: 6, kind: input, shape index: {}]
  %s7 = inlined_call_operand.vmem [shape: f32[2,1,32], index: 7, kind: input, shape index: {}]
  %s8 = inlined_call_operand.vmem [shape: f32[2,1,32], index: 8, kind: input, shape index: {}]
  %s9 = inlined_call_operand.vmem [shape: f32[2,1,32], index: 9, kind: input, shape index: {}]
  %s10 = inlined_call_operand.hbm [shape: bf16[2,32,64], index: 10, kind: input, shape index: {}]
  %s11 = inlined_call_operand.vmem [shape: f32[2,1,64], index: 11, kind: input, shape index: {}]
  %s12 = inlined_call_operand.vmem [shape: bf16[2,64,32], index: 12, kind: input, shape index: {}]
  %s13 = inlined_call_operand.vmem [shape: f32[2,1,32], index: 13, kind: input, shape index: {}]
  %s14 = inlined_call_operand.hbm [shape: f32[16,32], index: 14, kind: output, shape index: {}]
  %s15 = sld [smem:[#allocation0]]
  $region113: #{tpu_custom_call.1} parent=0
    _
  %s17 = ssub.s32 1, %s15
  %s18 = scalar_select 0, %s17, %s15
  $region1: #{tpu_custom_call.1} parent=0
    #allocation2 [shape = 'u8[8192]{0}', space=vmem, size = 0x2000, scoped, tag = 'input window, operand 0, single buffered']
    #allocation3 [shape = 's32[2]{0}', space=sflag, size = 0x8, scoped, tag = 'scoped memory for tpu_custom_call.1']
    #allocation4 [shape = 's32[2]{0}', space=sflag, size = 0x8, scoped, tag = 'scoped memory for tpu_custom_call.1']
    #allocation5 [shape = 'u8[1024]{0}', space=vmem, size = 0x400, scoped, tag = 'input window, operand 1']
    #allocation6 [shape = 's32[2]{0}', space=sflag, size = 0x8, scoped, tag = 'scoped memory for tpu_custom_call.1']
    #allocation7 [shape = 'u8[1024]{0}', space=vmem, size = 0x400, scoped, tag = 'input window, operand 2']
    #allocation8 [shape = 'u8[16384]{0}', space=vmem, size = 0x4000, scoped, tag = 'input window, operand 6']
    #allocation9 [shape = 's32[2]{0}', space=sflag, size = 0x8, scoped, tag = 'scoped memory for tpu_custom_call.1']
    #allocation10 [shape = 'u8[16384]{0}', space=vmem, size = 0x4000, scoped, tag = 'input window, operand 10']
    #allocation11 [shape = 'u8[8192]{0}', space=vmem, size = 0x2000, scoped, tag = 'output window, operand 0, single buffered']
    %19 = vsyncpa [#allocation3], 0
    %20 = vsyncpa [#allocation6], 0
    %s21 = scalar_lea.sflag [#allocation6], 1
    %22 = vsyncpa %s21, 0
    %23 = vsyncpa [#allocation9], 0
    %s24 = scalar_lea.sflag [#allocation9], 1
    %25 = vsyncpa %s24, 0
    %26 = vsyncpa [#allocation4], 0
    loop: start=0, step=1, limit=4
    $region2: #{tpu_custom_call.1} parent=1 // loop_pre_header
      _
    $region3: #{tpu_custom_call.1} parent=1 // loop_header
      %s28 = sphi 0, %s32
      %p29 = scmp.ge.s32.totalorder %s28, 4
      %s35 = sphi 0, %s47
      %s36 = sphi 0, %s43
      %s37 = sphi 0, %s35
      %s38 = sphi 0, %s36
      %s39 = sphi 0, %s37
      %s40 = sphi 0, %s38
      %s50 = sphi 0, %s52
      %s53 = sphi 0, %s50
      %s54 = sphi 0, %s53
      %s70 = sphi 0, %s54
      %s76 = sphi 0, %s78
      %s79 = sphi 0, %s76
      %s80 = sphi 0, %s79
      %s96 = sphi 0, %s80
      %s102 = sphi 0, %s104
      %s105 = sphi 0, %s102
      %s106 = sphi 0, %s105
      %s122 = sphi 0, %s106
      %s128 = sphi 0, %s130
      %s131 = sphi 0, %s128
      %s132 = sphi 0, %s131
      %s148 = sphi 0, %s132
      %s154 = sphi 0, %s156
      %s157 = sphi 0, %s154
      %s158 = sphi 0, %s157
      %s174 = sphi 0, %s158
      %s180 = sphi 0, %s182
      %s183 = sphi 0, %s180
      %s184 = sphi 0, %s183
      %s200 = sphi 0, %s184
      %s206 = sphi 0, %s208
      %s209 = sphi 0, %s206
      %s210 = sphi 0, %s209
      %s226 = sphi 0, %s210
      %s232 = sphi 0, %s234
      %s235 = sphi 0, %s232
      %s236 = sphi 0, %s235
      %s252 = sphi 0, %s236
      %s258 = sphi 0, %s260
      %s261 = sphi 0, %s258
      %s262 = sphi 0, %s261
      %s278 = sphi 0, %s262
      %s284 = sphi 0, %s286
      %s287 = sphi 0, %s284
      %s288 = sphi 0, %s287
      %s304 = sphi 0, %s288
      %s310 = sphi 0, %s312
      %s313 = sphi 0, %s310
      %s314 = sphi 0, %s313
      %s330 = sphi 0, %s314
      %s336 = sphi 0, %s338
      %s339 = sphi 0, %s336
      %s340 = sphi 0, %s339
      %s356 = sphi 0, %s340
      %s362 = sphi 0, %s364
      %s365 = sphi 0, %s362
      %s366 = sphi 0, %s365
      %s382 = sphi 0, %s366
      %s388 = sphi 0, %s390
      %s391 = sphi 0, %s388
      %s392 = sphi 0, %s391
      %s408 = sphi 0, %s392
      %s414 = sphi 0, %s416
      %s417 = sphi 0, %s414
      %s418 = sphi 0, %s417
      %s434 = sphi 0, %s418
    $region4: #{tpu_custom_call.1} parent=1 // loop_header_branch
      %31 = sbr.rel (%p29) target = $region8
    $region5: #{tpu_custom_call.1} parent=1 // loop_body
      %s33 = ssub.s32 %s28, 1
      %s34 = ssub.s32 %s28, 2
      %s41 = sadd.s32 1, %s36
      %p42 = scmp.ge.s32.totalorder %s41, 2
      %s43 = scalar_select %p42, 0, %s41
      %s44 = sadd.s32 1, %s35
      %s45 = scalar_select %p42, %s44, %s35
      %p46 = scmp.ge.s32.totalorder %s45, 1
      %s47 = scalar_select %p46, 0, %s45
      %s48 = ssub.s32 %s35, %s47
      %p49 = scmp.eq.s32.totalorder %s48, 0
      %s51 = sadd.s32 %s50, 1
      %s52 = scalar_select %p49, %s50, %s51
      %p55 = pneg %p49
      %p56 = scmp.eq.s32.totalorder %s28, 1
      %p57 = por %p55, %p56
      %p58 = scmp.ne.s32.totalorder %s50, %s53
      %p59 = scmp.eq.s32.totalorder %s28, 0
      %p60 = por %p58, %p59
      %p61 = scmp.ne.s32.totalorder %s50, %s53
      %p62 = scmp.eq.s32.totalorder %s33, 1
      %p63 = por %p61, %p62
      %p64 = scmp.ne.s32.totalorder %s53, %s54
      %p65 = scmp.eq.s32.totalorder %s33, 0
      %p66 = por %p64, %p65
      %p67 = scmp.ne.s32.totalorder %s53, %s54
      %p68 = scmp.eq.s32.totalorder %s34, 1
      %p69 = por %p67, %p68
      %p71 = scmp.ne.s32.totalorder %s54, %s70
      %p72 = scmp.eq.s32.totalorder %s34, 0
      %p73 = por %p71, %p72
      %s74 = ssub.s32 %s36, %s43
      %p75 = scmp.eq.s32.totalorder %s74, 0
      %s77 = sadd.s32 %s76, 1
      %s78 = scalar_select %p75, %s76, %s77
      %p81 = pneg %p75
      %p82 = scmp.eq.s32.totalorder %s28, 1
      %p83 = por %p81, %p82
      %p84 = scmp.ne.s32.totalorder %s76, %s79
      %p85 = scmp.eq.s32.totalorder %s28, 0
      %p86 = por %p84, %p85
      %p87 = scmp.ne.s32.totalorder %s76, %s79
      %p88 = scmp.eq.s32.totalorder %s33, 1
      %p89 = por %p87, %p88
      %p90 = scmp.ne.s32.totalorder %s79, %s80
      %p91 = scmp.eq.s32.totalorder %s33, 0
      %p92 = por %p90, %p91
      %p93 = scmp.ne.s32.totalorder %s79, %s80
      %p94 = scmp.eq.s32.totalorder %s34, 1
      %p95 = por %p93, %p94
      %p97 = scmp.ne.s32.totalorder %s80, %s96
      %p98 = scmp.eq.s32.totalorder %s34, 0
      %p99 = por %p97, %p98
      %s100 = ssub.s32 %s36, %s43
      %p101 = scmp.eq.s32.totalorder %s100, 0
      %s103 = sadd.s32 %s102, 1
      %s104 = scalar_select %p101, %s102, %s103
      %p107 = pneg %p101
      %p108 = scmp.eq.s32.totalorder %s28, 1
      %p109 = por %p107, %p108
      %p110 = scmp.ne.s32.totalorder %s102, %s105
      %p111 = scmp.eq.s32.totalorder %s28, 0
      %p112 = por %p110, %p111
      %p113 = scmp.ne.s32.totalorder %s102, %s105
      %p114 = scmp.eq.s32.totalorder %s33, 1
      %p115 = por %p113, %p114
      %p116 = scmp.ne.s32.totalorder %s105, %s106
      %p117 = scmp.eq.s32.totalorder %s33, 0
      %p118 = por %p116, %p117
      %p119 = scmp.ne.s32.totalorder %s105, %s106
      %p120 = scmp.eq.s32.totalorder %s34, 1
      %p121 = por %p119, %p120
      %p123 = scmp.ne.s32.totalorder %s106, %s122
      %p124 = scmp.eq.s32.totalorder %s34, 0
      %p125 = por %p123, %p124
      %s126 = ssub.s32 %s36, %s43
      %p127 = scmp.eq.s32.totalorder %s126, 0
      %s129 = sadd.s32 %s128, 1
      %s130 = scalar_select %p127, %s128, %s129
      %p133 = pneg %p127
      %p134 = scmp.eq.s32.totalorder %s28, 1
      %p135 = por %p133, %p134
      %p136 = scmp.ne.s32.totalorder %s128, %s131
      %p137 = scmp.eq.s32.totalorder %s28, 0
      %p138 = por %p136, %p137
      %p139 = scmp.ne.s32.totalorder %s128, %s131
      %p140 = scmp.eq.s32.totalorder %s33, 1
      %p141 = por %p139, %p140
      %p142 = scmp.ne.s32.totalorder %s131, %s132
      %p143 = scmp.eq.s32.totalorder %s33, 0
      %p144 = por %p142, %p143
      %p145 = scmp.ne.s32.totalorder %s131, %s132
      %p146 = scmp.eq.s32.totalorder %s34, 1
      %p147 = por %p145, %p146
      %p149 = scmp.ne.s32.totalorder %s132, %s148
      %p150 = scmp.eq.s32.totalorder %s34, 0
      %p151 = por %p149, %p150
      %s152 = ssub.s32 %s36, %s43
      %p153 = scmp.eq.s32.totalorder %s152, 0
      %s155 = sadd.s32 %s154, 1
      %s156 = scalar_select %p153, %s154, %s155
      %p159 = pneg %p153
      %p160 = scmp.eq.s32.totalorder %s28, 1
      %p161 = por %p159, %p160
      %p162 = scmp.ne.s32.totalorder %s154, %s157
      %p163 = scmp.eq.s32.totalorder %s28, 0
      %p164 = por %p162, %p163
      %p165 = scmp.ne.s32.totalorder %s154, %s157
      %p166 = scmp.eq.s32.totalorder %s33, 1
      %p167 = por %p165, %p166
      %p168 = scmp.ne.s32.totalorder %s157, %s158
      %p169 = scmp.eq.s32.totalorder %s33, 0
      %p170 = por %p168, %p169
      %p171 = scmp.ne.s32.totalorder %s157, %s158
      %p172 = scmp.eq.s32.totalorder %s34, 1
      %p173 = por %p171, %p172
      %p175 = scmp.ne.s32.totalorder %s158, %s174
      %p176 = scmp.eq.s32.totalorder %s34, 0
      %p177 = por %p175, %p176
      %s178 = ssub.s32 %s36, %s43
      %p179 = scmp.eq.s32.totalorder %s178, 0
      %s181 = sadd.s32 %s180, 1
      %s182 = scalar_select %p179, %s180, %s181
      %p185 = pneg %p179
      %p186 = scmp.eq.s32.totalorder %s28, 1
      %p187 = por %p185, %p186
      %p188 = scmp.ne.s32.totalorder %s180, %s183
      %p189 = scmp.eq.s32.totalorder %s28, 0
      %p190 = por %p188, %p189
      %p191 = scmp.ne.s32.totalorder %s180, %s183
      %p192 = scmp.eq.s32.totalorder %s33, 1
      %p193 = por %p191, %p192
      %p194 = scmp.ne.s32.totalorder %s183, %s184
      %p195 = scmp.eq.s32.totalorder %s33, 0
      %p196 = por %p194, %p195
      %p197 = scmp.ne.s32.totalorder %s183, %s184
      %p198 = scmp.eq.s32.totalorder %s34, 1
      %p199 = por %p197, %p198
      %p201 = scmp.ne.s32.totalorder %s184, %s200
      %p202 = scmp.eq.s32.totalorder %s34, 0
      %p203 = por %p201, %p202
      %s204 = ssub.s32 %s36, %s43
      %p205 = scmp.eq.s32.totalorder %s204, 0
      %s207 = sadd.s32 %s206, 1
      %s208 = scalar_select %p205, %s206, %s207
      %p211 = pneg %p205
      %p212 = scmp.eq.s32.totalorder %s28, 1
      %p213 = por %p211, %p212
      %p214 = scmp.ne.s32.totalorder %s206, %s209
      %p215 = scmp.eq.s32.totalorder %s28, 0
      %p216 = por %p214, %p215
      %p217 = scmp.ne.s32.totalorder %s206, %s209
      %p218 = scmp.eq.s32.totalorder %s33, 1
      %p219 = por %p217, %p218
      %p220 = scmp.ne.s32.totalorder %s209, %s210
      %p221 = scmp.eq.s32.totalorder %s33, 0
      %p222 = por %p220, %p221
      %p223 = scmp.ne.s32.totalorder %s209, %s210
      %p224 = scmp.eq.s32.totalorder %s34, 1
      %p225 = por %p223, %p224
      %p227 = scmp.ne.s32.totalorder %s210, %s226
      %p228 = scmp.eq.s32.totalorder %s34, 0
      %p229 = por %p227, %p228
      %s230 = ssub.s32 %s36, %s43
      %p231 = scmp.eq.s32.totalorder %s230, 0
      %s233 = sadd.s32 %s232, 1
      %s234 = scalar_select %p231, %s232, %s233
      %p237 = pneg %p231
      %p238 = scmp.eq.s32.totalorder %s28, 1
      %p239 = por %p237, %p238
      %p240 = scmp.ne.s32.totalorder %s232, %s235
      %p241 = scmp.eq.s32.totalorder %s28, 0
      %p242 = por %p240, %p241
      %p243 = scmp.ne.s32.totalorder %s232, %s235
      %p244 = scmp.eq.s32.totalorder %s33, 1
      %p245 = por %p243, %p244
      %p246 = scmp.ne.s32.totalorder %s235, %s236
      %p247 = scmp.eq.s32.totalorder %s33, 0
      %p248 = por %p246, %p247
      %p249 = scmp.ne.s32.totalorder %s235, %s236
      %p250 = scmp.eq.s32.totalorder %s34, 1
      %p251 = por %p249, %p250
      %p253 = scmp.ne.s32.totalorder %s236, %s252
      %p254 = scmp.eq.s32.totalorder %s34, 0
      %p255 = por %p253, %p254
      %s256 = ssub.s32 %s36, %s43
      %p257 = scmp.eq.s32.totalorder %s256, 0
      %s259 = sadd.s32 %s258, 1
      %s260 = scalar_select %p257, %s258, %s259
      %p263 = pneg %p257
      %p264 = scmp.eq.s32.totalorder %s28, 1
      %p265 = por %p263, %p264
      %p266 = scmp.ne.s32.totalorder %s258, %s261
      %p267 = scmp.eq.s32.totalorder %s28, 0
      %p268 = por %p266, %p267
      %p269 = scmp.ne.s32.totalorder %s258, %s261
      %p270 = scmp.eq.s32.totalorder %s33, 1
      %p271 = por %p269, %p270
      %p272 = scmp.ne.s32.totalorder %s261, %s262
      %p273 = scmp.eq.s32.totalorder %s33, 0
      %p274 = por %p272, %p273
      %p275 = scmp.ne.s32.totalorder %s261, %s262
      %p276 = scmp.eq.s32.totalorder %s34, 1
      %p277 = por %p275, %p276
      %p279 = scmp.ne.s32.totalorder %s262, %s278
      %p280 = scmp.eq.s32.totalorder %s34, 0
      %p281 = por %p279, %p280
      %s282 = ssub.s32 %s36, %s43
      %p283 = scmp.eq.s32.totalorder %s282, 0
      %s285 = sadd.s32 %s284, 1
      %s286 = scalar_select %p283, %s284, %s285
      %p289 = pneg %p283
      %p290 = scmp.eq.s32.totalorder %s28, 1
      %p291 = por %p289, %p290
      %p292 = scmp.ne.s32.totalorder %s284, %s287
      %p293 = scmp.eq.s32.totalorder %s28, 0
      %p294 = por %p292, %p293
      %p295 = scmp.ne.s32.totalorder %s284, %s287
      %p296 = scmp.eq.s32.totalorder %s33, 1
      %p297 = por %p295, %p296
      %p298 = scmp.ne.s32.totalorder %s287, %s288
      %p299 = scmp.eq.s32.totalorder %s33, 0
      %p300 = por %p298, %p299
      %p301 = scmp.ne.s32.totalorder %s287, %s288
      %p302 = scmp.eq.s32.totalorder %s34, 1
      %p303 = por %p301, %p302
      %p305 = scmp.ne.s32.totalorder %s288, %s304
      %p306 = scmp.eq.s32.totalorder %s34, 0
      %p307 = por %p305, %p306
      %s308 = ssub.s32 %s36, %s43
      %p309 = scmp.eq.s32.totalorder %s308, 0
      %s311 = sadd.s32 %s310, 1
      %s312 = scalar_select %p309, %s310, %s311
      %p315 = pneg %p309
      %p316 = scmp.eq.s32.totalorder %s28, 1
      %p317 = por %p315, %p316
      %p318 = scmp.ne.s32.totalorder %s310, %s313
      %p319 = scmp.eq.s32.totalorder %s28, 0
      %p320 = por %p318, %p319
      %p321 = scmp.ne.s32.totalorder %s310, %s313
      %p322 = scmp.eq.s32.totalorder %s33, 1
      %p323 = por %p321, %p322
      %p324 = scmp.ne.s32.totalorder %s313, %s314
      %p325 = scmp.eq.s32.totalorder %s33, 0
      %p326 = por %p324, %p325
      %p327 = scmp.ne.s32.totalorder %s313, %s314
      %p328 = scmp.eq.s32.totalorder %s34, 1
      %p329 = por %p327, %p328
      %p331 = scmp.ne.s32.totalorder %s314, %s330
      %p332 = scmp.eq.s32.totalorder %s34, 0
      %p333 = por %p331, %p332
      %s334 = ssub.s32 %s36, %s43
      %p335 = scmp.eq.s32.totalorder %s334, 0
      %s337 = sadd.s32 %s336, 1
      %s338 = scalar_select %p335, %s336, %s337
      %p341 = pneg %p335
      %p342 = scmp.eq.s32.totalorder %s28, 1
      %p343 = por %p341, %p342
      %p344 = scmp.ne.s32.totalorder %s336, %s339
      %p345 = scmp.eq.s32.totalorder %s28, 0
      %p346 = por %p344, %p345
      %p347 = scmp.ne.s32.totalorder %s336, %s339
      %p348 = scmp.eq.s32.totalorder %s33, 1
      %p349 = por %p347, %p348
      %p350 = scmp.ne.s32.totalorder %s339, %s340
      %p351 = scmp.eq.s32.totalorder %s33, 0
      %p352 = por %p350, %p351
      %p353 = scmp.ne.s32.totalorder %s339, %s340
      %p354 = scmp.eq.s32.totalorder %s34, 1
      %p355 = por %p353, %p354
      %p357 = scmp.ne.s32.totalorder %s340, %s356
      %p358 = scmp.eq.s32.totalorder %s34, 0
      %p359 = por %p357, %p358
      %s360 = ssub.s32 %s36, %s43
      %p361 = scmp.eq.s32.totalorder %s360, 0
      %s363 = sadd.s32 %s362, 1
      %s364 = scalar_select %p361, %s362, %s363
      %p367 = pneg %p361
      %p368 = scmp.eq.s32.totalorder %s28, 1
      %p369 = por %p367, %p368
      %p370 = scmp.ne.s32.totalorder %s362, %s365
      %p371 = scmp.eq.s32.totalorder %s28, 0
      %p372 = por %p370, %p371
      %p373 = scmp.ne.s32.totalorder %s362, %s365
      %p374 = scmp.eq.s32.totalorder %s33, 1
      %p375 = por %p373, %p374
      %p376 = scmp.ne.s32.totalorder %s365, %s366
      %p377 = scmp.eq.s32.totalorder %s33, 0
      %p378 = por %p376, %p377
      %p379 = scmp.ne.s32.totalorder %s365, %s366
      %p380 = scmp.eq.s32.totalorder %s34, 1
      %p381 = por %p379, %p380
      %p383 = scmp.ne.s32.totalorder %s366, %s382
      %p384 = scmp.eq.s32.totalorder %s34, 0
      %p385 = por %p383, %p384
      %s386 = ssub.s32 %s36, %s43
      %p387 = scmp.eq.s32.totalorder %s386, 0
      %s389 = sadd.s32 %s388, 1
      %s390 = scalar_select %p387, %s388, %s389
      %p393 = pneg %p387
      %p394 = scmp.eq.s32.totalorder %s28, 1
      %p395 = por %p393, %p394
      %p396 = scmp.ne.s32.totalorder %s388, %s391
      %p397 = scmp.eq.s32.totalorder %s28, 0
      %p398 = por %p396, %p397
      %p399 = scmp.ne.s32.totalorder %s388, %s391
      %p400 = scmp.eq.s32.totalorder %s33, 1
      %p401 = por %p399, %p400
      %p402 = scmp.ne.s32.totalorder %s391, %s392
      %p403 = scmp.eq.s32.totalorder %s33, 0
      %p404 = por %p402, %p403
      %p405 = scmp.ne.s32.totalorder %s391, %s392
      %p406 = scmp.eq.s32.totalorder %s34, 1
      %p407 = por %p405, %p406
      %p409 = scmp.ne.s32.totalorder %s392, %s408
      %p410 = scmp.eq.s32.totalorder %s34, 0
      %p411 = por %p409, %p410
      %s412 = ssub.s32 %s35, %s47
      %p413 = scmp.eq.s32.totalorder %s412, 0
      %s415 = sadd.s32 %s414, 1
      %s416 = scalar_select %p413, %s414, %s415
      %p419 = pneg %p413
      %p420 = scmp.eq.s32.totalorder %s28, 1
      %p421 = por %p419, %p420
      %p422 = scmp.ne.s32.totalorder %s414, %s417
      %p423 = scmp.eq.s32.totalorder %s28, 0
      %p424 = por %p422, %p423
      %p425 = scmp.ne.s32.totalorder %s414, %s417
      %p426 = scmp.eq.s32.totalorder %s33, 1
      %p427 = por %p425, %p426
      %p428 = scmp.ne.s32.totalorder %s417, %s418
      %p429 = scmp.eq.s32.totalorder %s33, 0
      %p430 = por %p428, %p429
      %p431 = scmp.ne.s32.totalorder %s417, %s418
      %p432 = scmp.eq.s32.totalorder %s34, 1
      %p433 = por %p431, %p432
      %p435 = scmp.ne.s32.totalorder %s418, %s434
      %p436 = scmp.eq.s32.totalorder %s34, 0
      %p437 = por %p435, %p436
      %p438 = scmp.le.s32.totalorder 1, %s28
      %p439 = scmp.lt.s32.totalorder %s28, 3
      %p440 = pnand %p438, %p439
      %p441 = pneg %p440
      // Predicated region
      $region9: #{tpu_custom_call.1} parent=5 // pred_check
        _
      $region10: #{tpu_custom_call.1} parent=5 // pred_check_branch
        %443 = sbr.rel (%p440) target = $region12
      $region11: #{tpu_custom_call.1} parent=5 // pred_region
        %s444 = ssub.s32 %s28, 1
        // Predicated region
        $region13: #{tpu_custom_call.1} parent=11 // pred_check
          %p445 = pneg %p66
        $region14: #{tpu_custom_call.1} parent=11 // pred_check_branch
          %447 = sbr.rel (%p445) target = $region16
        $region15: #{tpu_custom_call.1} parent=11 // pred_region
          %s448 = smul.u32 2, %s37
          %450 = vsyncadd [#allocation3], 0
          %s451 = smul.addr %s448, 8
          %s452 = scalar_lea.hbm %s0, %s451
          %s453 = sshll.u32 %s452, 4
          %s454 = int_to_ptr.hbm [resolvable:$true] %s453
          %s455 = sshll.u32 [#allocation2], 4
          %s456 = int_to_ptr.vmem [resolvable:$true] %s455
          %461 = dma.hbm_to_vmem [thread:$0]  %s454, 256, %s456, [#allocation3], 128, 128, 8
        $region16: #{tpu_custom_call.1} parent=11 // pred_fallthru
          _
      $region12: #{tpu_custom_call.1} parent=5 // pred_fallthru
        _
      %p462 = scmp.lt.s32.totalorder %s28, 2
      // Predicated region
      $region17: #{tpu_custom_call.1} parent=5 // pred_check
        %p463 = pneg %p462
      $region18: #{tpu_custom_call.1} parent=5 // pred_check_branch
        %465 = sbr.rel (%p463) target = $region20
      $region19: #{tpu_custom_call.1} parent=5 // pred_region
        // Predicated region
        $region21: #{tpu_custom_call.1} parent=19 // pred_check
          %p466 = pneg %p86
        $region22: #{tpu_custom_call.1} parent=19 // pred_check_branch
          %468 = sbr.rel (%p466) target = $region24
        $region23: #{tpu_custom_call.1} parent=19 // pred_region
          %s469 = sand.u32 %s28, 1
          %s470 = scalar_lea.sflag [#allocation6], %s469
          %s471 = sand.u32 %s76, 1
          %s472 = scalar_lea.vmem [#allocation5], %s471
          %474 = vsyncadd %s470, 0
          %s475 = scalar_lea.hbm %s1, %s36
          %s477 = sshll.u32 %s475, 4
          %s478 = int_to_ptr.hbm [resolvable:$true] %s477
          %s479 = sshll.u32 %s472, 4
          %s480 = int_to_ptr.vmem [resolvable:$true] %s479
          %482 = dma.hbm_to_vmem [thread:$0]  %s478, 16, %s480, %s470
        $region24: #{tpu_custom_call.1} parent=19 // pred_fallthru
          _
        // Predicated region
        $region25: #{tpu_custom_call.1} parent=19 // pred_check
          %p483 = pneg %p112
        $region26: #{tpu_custom_call.1} parent=19 // pred_check_branch
          %485 = sbr.rel (%p483) target = $region28
        $region27: #{tpu_custom_call.1} parent=19 // pred_region
          %s486 = sand.u32 %s28, 1
          %s487 = scalar_lea.sflag [#allocation6], %s486
          %s488 = sand.u32 %s102, 1
          %s489 = scalar_lea.vmem [#allocation7], %s488
          %491 = vsyncadd %s487, 0
          %s492 = scalar_lea.hbm %s2, %s36
          %s494 = sshll.u32 %s492, 4
          %s495 = int_to_ptr.hbm [resolvable:$true] %s494
          %s496 = sshll.u32 %s489, 4
          %s497 = int_to_ptr.vmem [resolvable:$true] %s496
          %499 = dma.hbm_to_vmem [thread:$0]  %s495, 16, %s497, %s487
        $region28: #{tpu_custom_call.1} parent=19 // pred_fallthru
          _
        // Predicated region
        $region29: #{tpu_custom_call.1} parent=19 // pred_check
          %p500 = pneg %p138
        $region30: #{tpu_custom_call.1} parent=19 // pred_check_branch
          %502 = sbr.rel (%p500) target = $region32
        $region31: #{tpu_custom_call.1} parent=19 // pred_region
          %p503 = scmp.lt.s32.totalorder %s36, 1
          %s504 = scalar_select %p503, %s36, 1
          %s505 = smul.addr %s504, 4
          %s506 = smul.addr %s505, 4
          %s507 = scalar_lea.vmem %s3, %s506
        $region32: #{tpu_custom_call.1} parent=19 // pred_fallthru
          _
        // Predicated region
        $region33: #{tpu_custom_call.1} parent=19 // pred_check
          %p508 = pneg %p164
        $region34: #{tpu_custom_call.1} parent=19 // pred_check_branch
          %510 = sbr.rel (%p508) target = $region36
        $region35: #{tpu_custom_call.1} parent=19 // pred_region
          %p511 = scmp.lt.s32.totalorder %s36, 1
          %s512 = scalar_select %p511, %s36, 1
          %s513 = smul.addr %s512, 4
          %s514 = smul.addr %s513, 4
          %s515 = scalar_lea.vmem %s4, %s514
        $region36: #{tpu_custom_call.1} parent=19 // pred_fallthru
          _
        // Predicated region
        $region37: #{tpu_custom_call.1} parent=19 // pred_check
          %p516 = pneg %p190
        $region38: #{tpu_custom_call.1} parent=19 // pred_check_branch
          %518 = sbr.rel (%p516) target = $region40
        $region39: #{tpu_custom_call.1} parent=19 // pred_region
          %p519 = scmp.lt.s32.totalorder %s36, 1
          %s520 = scalar_select %p519, %s36, 1
          %s521 = smul.addr %s520, 4
          %s522 = smul.addr %s521, 4
          %s523 = scalar_lea.vmem %s5, %s522
        $region40: #{tpu_custom_call.1} parent=19 // pred_fallthru
          _
        // Predicated region
        $region41: #{tpu_custom_call.1} parent=19 // pred_check
          %p524 = pneg %p216
        $region42: #{tpu_custom_call.1} parent=19 // pred_check_branch
          %526 = sbr.rel (%p524) target = $region44
        $region43: #{tpu_custom_call.1} parent=19 // pred_region
          %s527 = sand.u32 %s28, 1
          %s528 = scalar_lea.sflag [#allocation9], %s527
          %s529 = sand.u32 %s206, 1
          %s530 = smul.addr %s529, 16
          %s531 = scalar_lea.vmem [#allocation8], %s530
          %533 = vsyncadd %s528, 0
          %s534 = smul.addr %s36, 4
          %s535 = smul.addr %s534, 4
          %s536 = scalar_lea.hbm %s6, %s535
          %s537 = sshll.u32 %s536, 4
          %s538 = int_to_ptr.hbm [resolvable:$true] %s537
          %s539 = sshll.u32 %s531, 4
          %s540 = int_to_ptr.vmem [resolvable:$true] %s539
          %545 = dma.hbm_to_vmem [thread:$0]  %s538, 256, %s540, %s528, 64, 64, 4
        $region44: #{tpu_custom_call.1} parent=19 // pred_fallthru
          _
        // Predicated region
        $region45: #{tpu_custom_call.1} parent=19 // pred_check
          %p546 = pneg %p242
        $region46: #{tpu_custom_call.1} parent=19 // pred_check_branch
          %548 = sbr.rel (%p546) target = $region48
        $region47: #{tpu_custom_call.1} parent=19 // pred_region
          %p549 = scmp.lt.s32.totalorder %s36, 1
          %s550 = scalar_select %p549, %s36, 1
          %s551 = scalar_lea.vmem %s7, %s550
        $region48: #{tpu_custom_call.1} parent=19 // pred_fallthru
          _
        // Predicated region
        $region49: #{tpu_custom_call.1} parent=19 // pred_check
          %p552 = pneg %p268
        $region50: #{tpu_custom_call.1} parent=19 // pred_check_branch
          %554 = sbr.rel (%p552) target = $region52
        $region51: #{tpu_custom_call.1} parent=19 // pred_region
          %p555 = scmp.lt.s32.totalorder %s36, 1
          %s556 = scalar_select %p555, %s36, 1
          %s557 = scalar_lea.vmem %s8, %s556
        $region52: #{tpu_custom_call.1} parent=19 // pred_fallthru
          _
        // Predicated region
        $region53: #{tpu_custom_call.1} parent=19 // pred_check
          %p558 = pneg %p294
        $region54: #{tpu_custom_call.1} parent=19 // pred_check_branch
          %560 = sbr.rel (%p558) target = $region56
        $region55: #{tpu_custom_call.1} parent=19 // pred_region
          %p561 = scmp.lt.s32.totalorder %s36, 1
          %s562 = scalar_select %p561, %s36, 1
          %s563 = scalar_lea.vmem %s9, %s562
        $region56: #{tpu_custom_call.1} parent=19 // pred_fallthru
          _
        // Predicated region
        $region57: #{tpu_custom_call.1} parent=19 // pred_check
          %p564 = pneg %p320
        $region58: #{tpu_custom_call.1} parent=19 // pred_check_branch
          %566 = sbr.rel (%p564) target = $region60
        $region59: #{tpu_custom_call.1} parent=19 // pred_region
          %s567 = sand.u32 %s28, 1
          %s568 = scalar_lea.sflag [#allocation9], %s567
          %s569 = sand.u32 %s310, 1
          %s570 = smul.addr %s569, 16
          %s571 = scalar_lea.vmem [#allocation10], %s570
          %573 = vsyncadd %s568, 0
          %s574 = smul.addr %s36, 4
          %s575 = smul.addr %s574, 4
          %s576 = scalar_lea.hbm %s10, %s575
          %s577 = sshll.u32 %s576, 4
          %s578 = int_to_ptr.hbm [resolvable:$true] %s577
          %s579 = sshll.u32 %s571, 4
          %s580 = int_to_ptr.vmem [resolvable:$true] %s579
          %585 = dma.hbm_to_vmem [thread:$0]  %s578, 256, %s580, %s568, 64, 64, 4
        $region60: #{tpu_custom_call.1} parent=19 // pred_fallthru
          _
        // Predicated region
        $region61: #{tpu_custom_call.1} parent=19 // pred_check
          %p586 = pneg %p346
        $region62: #{tpu_custom_call.1} parent=19 // pred_check_branch
          %588 = sbr.rel (%p586) target = $region64
        $region63: #{tpu_custom_call.1} parent=19 // pred_region
          %p589 = scmp.lt.s32.totalorder %s36, 1
          %s590 = scalar_select %p589, %s36, 1
          %s591 = scalar_lea.vmem %s11, %s590
        $region64: #{tpu_custom_call.1} parent=19 // pred_fallthru
          _
        // Predicated region
        $region65: #{tpu_custom_call.1} parent=19 // pred_check
          %p592 = pneg %p372
        $region66: #{tpu_custom_call.1} parent=19 // pred_check_branch
          %594 = sbr.rel (%p592) target = $region68
        $region67: #{tpu_custom_call.1} parent=19 // pred_region
          %p595 = scmp.lt.s32.totalorder %s36, 1
          %s596 = scalar_select %p595, %s36, 1
          %s597 = smul.addr %s596, 8
          %s598 = smul.addr %s597, 4
          %s599 = scalar_lea.vmem %s12, %s598
        $region68: #{tpu_custom_call.1} parent=19 // pred_fallthru
          _
        // Predicated region
        $region69: #{tpu_custom_call.1} parent=19 // pred_check
          %p600 = pneg %p398
        $region70: #{tpu_custom_call.1} parent=19 // pred_check_branch
          %602 = sbr.rel (%p600) target = $region72
        $region71: #{tpu_custom_call.1} parent=19 // pred_region
          %p603 = scmp.lt.s32.totalorder %s36, 1
          %s604 = scalar_select %p603, %s36, 1
          %s605 = scalar_lea.vmem %s13, %s604
        $region72: #{tpu_custom_call.1} parent=19 // pred_fallthru
          _
      $region20: #{tpu_custom_call.1} parent=5 // pred_fallthru
        _
      %p606 = scmp.le.s32.totalorder 1, %s28
      %p607 = scmp.lt.s32.totalorder %s28, 3
      %p608 = pnand %p606, %p607
      %p609 = pneg %p608
      // Predicated region
      $region73: #{tpu_custom_call.1} parent=5 // pred_check
        _
      $region74: #{tpu_custom_call.1} parent=5 // pred_check_branch
        %611 = sbr.rel (%p608) target = $region76
      $region75: #{tpu_custom_call.1} parent=5 // pred_region
        %s612 = ssub.s32 %s28, 1
        // Predicated region
        $region77: #{tpu_custom_call.1} parent=75 // pred_check
          %p613 = pneg %p66
        $region78: #{tpu_custom_call.1} parent=75 // pred_check_branch
          %615 = sbr.rel (%p613) target = $region80
        $region79: #{tpu_custom_call.1} parent=75 // pred_region
          %617 = dma.done [#allocation3], 256
        $region80: #{tpu_custom_call.1} parent=75 // pred_fallthru
          _
        %s618 = sand.u32 %s33, 1
        %s619 = scalar_lea.sflag [#allocation6], %s618
        %s620 = sand.u32 %s79, 1
        %s621 = scalar_lea.vmem [#allocation5], %s620
        // Predicated region
        $region81: #{tpu_custom_call.1} parent=75 // pred_check
          %p622 = pneg %p92
        $region82: #{tpu_custom_call.1} parent=75 // pred_check_branch
          %624 = sbr.rel (%p622) target = $region84
        $region83: #{tpu_custom_call.1} parent=75 // pred_region
          %626 = dma.done %s619, 16
        $region84: #{tpu_custom_call.1} parent=75 // pred_fallthru
          _
        %s627 = sand.u32 %s33, 1
        %s628 = scalar_lea.sflag [#allocation6], %s627
        %s629 = sand.u32 %s105, 1
        %s630 = scalar_lea.vmem [#allocation7], %s629
        // Predicated region
        $region85: #{tpu_custom_call.1} parent=75 // pred_check
          %p631 = pneg %p118
        $region86: #{tpu_custom_call.1} parent=75 // pred_check_branch
          %633 = sbr.rel (%p631) target = $region88
        $region87: #{tpu_custom_call.1} parent=75 // pred_region
          %635 = dma.done %s628, 16
        $region88: #{tpu_custom_call.1} parent=75 // pred_fallthru
          _
        %s636 = sand.u32 %s33, 1
        %s637 = scalar_lea.sflag [#allocation9], %s636
        %s638 = sand.u32 %s209, 1
        %s639 = smul.addr %s638, 16
        %s640 = scalar_lea.vmem [#allocation8], %s639
        // Predicated region
        $region89: #{tpu_custom_call.1} parent=75 // pred_check
          %p641 = pneg %p222
        $region90: #{tpu_custom_call.1} parent=75 // pred_check_branch
          %643 = sbr.rel (%p641) target = $region92
        $region91: #{tpu_custom_call.1} parent=75 // pred_region
          %645 = dma.done %s637, 256
        $region92: #{tpu_custom_call.1} parent=75 // pred_fallthru
          _
        %s646 = sand.u32 %s33, 1
        %s647 = scalar_lea.sflag [#allocation9], %s646
        %s648 = sand.u32 %s313, 1
        %s649 = smul.addr %s648, 16
        %s650 = scalar_lea.vmem [#allocation10], %s649
        // Predicated region
        $region93: #{tpu_custom_call.1} parent=75 // pred_check
          %p651 = pneg %p326
        $region94: #{tpu_custom_call.1} parent=75 // pred_check_branch
          %653 = sbr.rel (%p651) target = $region96
        $region95: #{tpu_custom_call.1} parent=75 // pred_region
          %655 = dma.done %s647, 256
        $region96: #{tpu_custom_call.1} parent=75 // pred_fallthru
          _
        %p656 = pneg %p66
        %p657 = pneg %p63
        %s658 = sand.u32 %s33, 1
        %s659 = scalar_lea.sflag [#allocation6], %s658
        %s660 = sand.u32 %s79, 1
        %s661 = scalar_lea.vmem [#allocation5], %s660
        %p662 = pneg %p92
        %p663 = pneg %p89
        %s664 = sand.u32 %s33, 1
        %s665 = scalar_lea.sflag [#allocation6], %s664
        %s666 = sand.u32 %s105, 1
        %s667 = scalar_lea.vmem [#allocation7], %s666
        %p668 = pneg %p118
        %p669 = pneg %p115
        %p670 = scmp.lt.s32.totalorder %s38, 1
        %s671 = scalar_select %p670, %s38, 1
        %s672 = smul.addr %s671, 4
        %s673 = smul.addr %s672, 4
        %s674 = scalar_lea.vmem %s3, %s673
        %p675 = pneg %p144
        %p676 = pneg %p141
        %p677 = scmp.lt.s32.totalorder %s38, 1
        %s678 = scalar_select %p677, %s38, 1
        %s679 = smul.addr %s678, 4
        %s680 = smul.addr %s679, 4
        %s681 = scalar_lea.vmem %s4, %s680
        %p682 = pneg %p170
        %p683 = pneg %p167
        %p684 = scmp.lt.s32.totalorder %s38, 1
        %s685 = scalar_select %p684, %s38, 1
        %s686 = smul.addr %s685, 4
        %s687 = smul.addr %s686, 4
        %s688 = scalar_lea.vmem %s5, %s687
        %p689 = pneg %p196
        %p690 = pneg %p193
        %s691 = sand.u32 %s33, 1
        %s692 = scalar_lea.sflag [#allocation9], %s691
        %s693 = sand.u32 %s209, 1
        %s694 = smul.addr %s693, 16
        %s695 = scalar_lea.vmem [#allocation8], %s694
        %p696 = pneg %p222
        %p697 = pneg %p219
        %p698 = scmp.lt.s32.totalorder %s38, 1
        %s699 = scalar_select %p698, %s38, 1
        %s700 = scalar_lea.vmem %s7, %s699
        %p701 = pneg %p248
        %p702 = pneg %p245
        %p703 = scmp.lt.s32.totalorder %s38, 1
        %s704 = scalar_select %p703, %s38, 1
        %s705 = scalar_lea.vmem %s8, %s704
        %p706 = pneg %p274
        %p707 = pneg %p271
        %p708 = scmp.lt.s32.totalorder %s38, 1
        %s709 = scalar_select %p708, %s38, 1
        %s710 = scalar_lea.vmem %s9, %s709
        %p711 = pneg %p300
        %p712 = pneg %p297
        %s713 = sand.u32 %s33, 1
        %s714 = scalar_lea.sflag [#allocation9], %s713
        %s715 = sand.u32 %s313, 1
        %s716 = smul.addr %s715, 16
        %s717 = scalar_lea.vmem [#allocation10], %s716
        %p718 = pneg %p326
        %p719 = pneg %p323
        %p720 = scmp.lt.s32.totalorder %s38, 1
        %s721 = scalar_select %p720, %s38, 1
        %s722 = scalar_lea.vmem %s11, %s721
        %p723 = pneg %p352
        %p724 = pneg %p349
        %p725 = scmp.lt.s32.totalorder %s38, 1
        %s726 = scalar_select %p725, %s38, 1
        %s727 = smul.addr %s726, 8
        %s728 = smul.addr %s727, 4
        %s729 = scalar_lea.vmem %s12, %s728
        %p730 = pneg %p378
        %p731 = pneg %p375
        %p732 = scmp.lt.s32.totalorder %s38, 1
        %s733 = scalar_select %p732, %s38, 1
        %s734 = scalar_lea.vmem %s13, %s733
        %p735 = pneg %p404
        %p736 = pneg %p401
        %p737 = pneg %p430
        %p738 = pneg %p427
        %s739 = smul.u32 2, %s37
        %p740 = scmp.lt.s32.totalorder %s38, 1
        %s741 = scalar_select %p740, %s38, 1
        %s742 = smul.addr %s741, 4
        %s743 = smul.addr %s742, 4
        %s744 = scalar_lea.vmem %s3, %s743
        %p745 = scmp.lt.s32.totalorder %s38, 1
        %s746 = scalar_select %p745, %s38, 1
        %s747 = smul.addr %s746, 4
        %s748 = smul.addr %s747, 4
        %s749 = scalar_lea.vmem %s4, %s748
        %p750 = scmp.lt.s32.totalorder %s38, 1
        %s751 = scalar_select %p750, %s38, 1
        %s752 = smul.addr %s751, 4
        %s753 = smul.addr %s752, 4
        %s754 = scalar_lea.vmem %s5, %s753
        %p755 = scmp.lt.s32.totalorder %s38, 1
        %s756 = scalar_select %p755, %s38, 1
        %s757 = scalar_lea.vmem %s7, %s756
        %p758 = scmp.lt.s32.totalorder %s38, 1
        %s759 = scalar_select %p758, %s38, 1
        %s760 = scalar_lea.vmem %s8, %s759
        %p761 = scmp.lt.s32.totalorder %s38, 1
        %s762 = scalar_select %p761, %s38, 1
        %s763 = scalar_lea.vmem %s9, %s762
        %p764 = scmp.lt.s32.totalorder %s38, 1
        %s765 = scalar_select %p764, %s38, 1
        %s766 = scalar_lea.vmem %s11, %s765
        %p767 = scmp.lt.s32.totalorder %s38, 1
        %s768 = scalar_select %p767, %s38, 1
        %s769 = smul.addr %s768, 8
        %s770 = smul.addr %s769, 4
        %s771 = scalar_lea.vmem %s12, %s770
        %p772 = scmp.lt.s32.totalorder %s38, 1
        %s773 = scalar_select %p772, %s38, 1
        %s774 = scalar_lea.vmem %s13, %s773
        %s775 = smul.u32 2, %s37
        %p777 = scmp.eq.s32.totalorder %s38, 0
        // Predicated region
        $region97: #{tpu_custom_call.1} parent=75 // pred_check
          %p778 = pneg %p777
        $region98: #{tpu_custom_call.1} parent=75 // pred_check_branch
          %780 = sbr.rel (%p778) target = $region100
        $region99: #{tpu_custom_call.1} parent=75 // pred_region
          %v781 = vld [vmem:[#allocation2] sm:$0xff]
          %v782 = vld [vmem:[#allocation2 + $0x8] sm:$0xff]
          %vm783 = vcmask 261120
          %784 = vst.msk [vmem:[#allocation11] sm:$0xff] %vm783, %v781
          %785 = vst.msk [vmem:[#allocation11 + $0x8] sm:$0xff] %vm783, %v782
        $region100: #{tpu_custom_call.1} parent=75 // pred_fallthru
          _
        %v786 = vld [vmem:[#allocation11] sm:$0xff]
        %v787 = vld [vmem:[#allocation11 + $0x8] sm:$0xff]
        %vm788 = vcmask 261120
        %v789 = vsel %vm788, %v786, 0.0
        %790 = vadd.xlane.f32.xlu0 %v789
        %v791 = vpop.xlane.xlu0 %790
        %v792 = vsel %vm788, %v787, 0.0
        %793 = vadd.xlane.f32.xlu0 %v792
        %v794 = vpop.xlane.xlu0 %793
        %v795 = vrcp.pop 32.0
        %v796 = vmul.f32 32.0, %v795
        %v797 = vsub.f32 1.0, %v796
        %v798 = vmul.f32 %v795, %v797
        %v799 = vadd.f32 %v795, %v798
        %vm800 = vweird.f32 %v795
        %v801 = vsel %vm800, %v795, %v799
        %v802 = vmul.f32 %v791, %v801
        %v803 = vmul.f32 %v794, %v801
        %v804 = vsub.f32 %v786, %v802
        %v805 = vsub.f32 %v787, %v803
        %v806 = vmul.f32 %v804, %v804
        %v807 = vmul.f32 %v805, %v805
        %v808 = vsel %vm788, %v806, 0.0
        %809 = vadd.xlane.f32.xlu0 %v808
        %v810 = vpop.xlane.xlu0 %809
        %v811 = vsel %vm788, %v807, 0.0
        %812 = vadd.xlane.f32.xlu0 %v811
        %v813 = vpop.xlane.xlu0 %812
        %v814 = vmul.f32 %v810, %v801
        %v815 = vmul.f32 %v813, %v801
        %v816 = vadd.f32 %v814, 1e-05
        %v817 = vadd.f32 %v815, 1e-05
        %v818 = vrsqrt.pop %v816
        %v819 = vmul.f32 %v818, %v816
        %v820 = vmul.f32 %v819, %v818
        %v821 = vmul.f32 0.5, %v820
        %v822 = vsub.f32 1.5, %v821
        %v823 = vmul.f32 %v818, %v822
        %vm824 = vweird.f32 %v816
        %vm825 = vweird.f32 %v818
        %vm826 = vmor %vm824, %vm825
        %v827 = vsel %vm826, %v818, %v823
        %v828 = vrsqrt.pop %v817
        %v829 = vmul.f32 %v828, %v817
        %v830 = vmul.f32 %v829, %v828
        %v831 = vmul.f32 0.5, %v830
        %v832 = vsub.f32 1.5, %v831
        %v833 = vmul.f32 %v828, %v832
        %vm834 = vweird.f32 %v817
        %vm835 = vweird.f32 %v828
        %vm836 = vmor %vm834, %vm835
        %v837 = vsel %vm836, %v828, %v833
        %v838 = vmul.f32 %v804, %v827
        %v839 = vmul.f32 %v805, %v837
        %v840 = vld [vmem:[%s621] sm:$0x1]
        %v842 = vperm.slane %v840, 0
        %v844 = vmul.f32 %v838, %v842
        %v845 = vmul.f32 %v839, %v842
        %v846 = vld [vmem:[%s630] sm:$0x1]
        %v848 = vperm.slane %v846, 0
        %v850 = vadd.f32 %v844, %v848
        %v851 = vadd.f32 %v845, %v848
        %v852 = vpack.c.bf16 %v851, %v850
        %v853 = vld [vmem:[%s744] sm:$0xf]
        %v854 = vld [vmem:[%s744 + $0x4] sm:$0xf]
        %v855 = vld [vmem:[%s744 + $0x8] sm:$0xf]
        %v856 = vld [vmem:[%s744 + $0xc] sm:$0xf]
        %v861 = vunpack.c.l.b16 %v853
        %v862 = vunpack.c.l.b16 %v854
        %v863 = vunpack.c.l.b16 %v855
        %v864 = vunpack.c.l.b16 %v856
        %v865 = vpack.c.b16 %v862, %v861
        %v866 = vpack.c.b16 %v864, %v863
        %v870 = vsel %vm788, %v852, 0
        %872 = vmatpush.bf16.msra.mxu0 0
        %873 = vmatpush.bf16.msra.mxu0 0
        %874 = vmatpush.bf16.msra.mxu0 0
        %875 = vmatpush.bf16.msra.mxu0 0
        %876 = vmatpush.bf16.msra.mxu0 0
        %877 = vmatpush.bf16.msra.mxu0 0
        %878 = vmatpush.bf16.msra.mxu0 %v866
        %879 = vmatpush.bf16.msra.mxu0 %v865
        %880 = vmatmul.bf16.gmra.mxu0 %v870
        %v881 = vpop.f32.mrf.mxu0
        %v882 = vadd.f32 0.0, %v881
        %v883 = vpop.f32.mrf.mxu0
        %v884 = vadd.f32 0.0, %v883
        %885 = vdwg.mxu0
        %v886 = vld [vmem:[%s749] sm:$0xf]
        %v887 = vld [vmem:[%s749 + $0x4] sm:$0xf]
        %v888 = vld [vmem:[%s749 + $0x8] sm:$0xf]
        %v889 = vld [vmem:[%s749 + $0xc] sm:$0xf]
        %v894 = vunpack.c.l.b16 %v886
        %v895 = vunpack.c.l.b16 %v887
        %v896 = vunpack.c.l.b16 %v888
        %v897 = vunpack.c.l.b16 %v889
        %v898 = vpack.c.b16 %v895, %v894
        %v899 = vpack.c.b16 %v897, %v896
        %902 = vmatpush.bf16.msra.mxu0 0
        %903 = vmatpush.bf16.msra.mxu0 0
        %904 = vmatpush.bf16.msra.mxu0 0
        %905 = vmatpush.bf16.msra.mxu0 0
        %906 = vmatpush.bf16.msra.mxu0 0
        %907 = vmatpush.bf16.msra.mxu0 0
        %908 = vmatpush.bf16.msra.mxu0 %v899
        %909 = vmatpush.bf16.msra.mxu0 %v898
        %910 = vmatmul.bf16.gmra.mxu0 %v870
        %v911 = vpop.f32.mrf.mxu0
        %v912 = vadd.f32 0.0, %v911
        %v913 = vpop.f32.mrf.mxu0
        %v914 = vadd.f32 0.0, %v913
        %915 = vdwg.mxu0
        %v916 = vld [vmem:[%s754] sm:$0xf]
        %v917 = vld [vmem:[%s754 + $0x4] sm:$0xf]
        %v918 = vld [vmem:[%s754 + $0x8] sm:$0xf]
        %v919 = vld [vmem:[%s754 + $0xc] sm:$0xf]
        %v924 = vunpack.c.l.b16 %v916
        %v925 = vunpack.c.l.b16 %v917
        %v926 = vunpack.c.l.b16 %v918
        %v927 = vunpack.c.l.b16 %v919
        %v928 = vpack.c.b16 %v925, %v924
        %v929 = vpack.c.b16 %v927, %v926
        %932 = vmatpush.bf16.msra.mxu0 0
        %933 = vmatpush.bf16.msra.mxu0 0
        %934 = vmatpush.bf16.msra.mxu0 0
        %935 = vmatpush.bf16.msra.mxu0 0
        %936 = vmatpush.bf16.msra.mxu0 0
        %937 = vmatpush.bf16.msra.mxu0 0
        %938 = vmatpush.bf16.msra.mxu0 %v929
        %939 = vmatpush.bf16.msra.mxu0 %v928
        %940 = vmatmul.bf16.gmra.mxu0 %v870
        %v941 = vpop.f32.mrf.mxu0
        %v942 = vadd.f32 0.0, %v941
        %v943 = vpop.f32.mrf.mxu0
        %v944 = vadd.f32 0.0, %v943
        %945 = vdwg.mxu0
        %947 = vrot.lane.b32.xlu0 %v882, 120
        %v948 = vpop.permute.xlu0 %947
        %950 = vrot.lane.b32.xlu0 %v882, 112
        %v951 = vpop.permute.xlu0 %950
        %953 = vrot.lane.b32.xlu0 %v882, 104
        %v954 = vpop.permute.xlu0 %953
        %v956 = vrot.slane %v951, 4
        %vm957 = vcmask 1047556
        %v958 = vsel %vm957, %v956, %v882
        %v959 = vrot.slane %v882, 4
        %v960 = vsel %vm957, %v951, %v959
        %v962 = vunpack.c.l.s4 1983009808
        %v963 = vunpack.c.0.s8 %v962
        %v964 = vperm.slane %v958, %v963
        %v966 = vunpack.c.l.s4 1983009808
        %v967 = vunpack.c.0.s8 %v966
        %v968 = vperm.slane %v960, %v967
        %v969 = vrot.slane %v954, 4
        %v970 = vsel %vm957, %v969, %v948
        %v971 = vrot.slane %v948, 4
        %v972 = vsel %vm957, %v954, %v971
        %v974 = vunpack.c.l.s4 1983009808
        %v975 = vunpack.c.0.s8 %v974
        %v976 = vperm.slane %v970, %v975
        %v978 = vunpack.c.l.s4 1983009808
        %v979 = vunpack.c.0.s8 %v978
        %v980 = vperm.slane %v972, %v979
        %v981 = vrot.slane %v976, 4
        %v982 = vsel %vm957, %v981, %v964
        %v983 = vrot.slane %v964, 4
        %v984 = vsel %vm957, %v976, %v983
        %v986 = vunpack.c.l.s4 1934713408
        %v987 = vunpack.c.0.s8 %v986
        %v988 = vperm.slane %v982, %v987
        %v990 = vunpack.c.l.s4 1934713408
        %v991 = vunpack.c.0.s8 %v990
        %v992 = vperm.slane %v984, %v991
        %v993 = vrot.slane %v980, 4
        %v994 = vsel %vm957, %v993, %v968
        %v995 = vrot.slane %v968, 4
        %v996 = vsel %vm957, %v980, %v995
        %v998 = vunpack.c.l.s4 1934713408
        %v999 = vunpack.c.0.s8 %v998
        %v1000 = vperm.slane %v994, %v999
        %v1002 = vunpack.c.l.s4 1934713408
        %v1003 = vunpack.c.0.s8 %v1002
        %v1004 = vperm.slane %v996, %v1003
        %v1005 = vrot.slane %v988, 4
        %v1006 = vsel %vm957, 0.0, %v1005
        %v1007 = vrot.slane %v992, 4
        %v1008 = vsel %vm957, 0.0, %v1007
        %v1009 = vrot.slane %v1000, 4
        %v1010 = vsel %vm957, 0.0, %v1009
        %v1011 = vrot.slane %v1004, 4
        %v1012 = vsel %vm957, 0.0, %v1011
        %v1013 = vsel %vm957, %v1007, %v988
        %v1015 = vunpack.c.l.s4 1983009808
        %v1016 = vunpack.c.0.s8 %v1015
        %v1017 = vperm.slane %v1013, %v1016
        %v1018 = vrot.slane %v1008, 4
        %v1019 = vsel %vm957, %v1018, %v1006
        %v1021 = vunpack.c.l.s4 1983009808
        %v1022 = vunpack.c.0.s8 %v1021
        %v1023 = vperm.slane %v1019, %v1022
        %v1024 = vsel %vm957, %v1011, %v1000
        %v1026 = vunpack.c.l.s4 1983009808
        %v1027 = vunpack.c.0.s8 %v1026
        %v1028 = vperm.slane %v1024, %v1027
        %v1029 = vrot.slane %v1012, 4
        %v1030 = vsel %vm957, %v1029, %v1010
        %v1032 = vunpack.c.l.s4 1983009808
        %v1033 = vunpack.c.0.s8 %v1032
        %v1034 = vperm.slane %v1030, %v1033
        %v1035 = vrot.slane %v1023, 4
        %v1036 = vsel %vm957, %v1035, %v1017
        %v1037 = vrot.slane %v1017, 4
        %v1038 = vsel %vm957, %v1023, %v1037
        %v1040 = vunpack.c.l.s4 1934713408
        %v1041 = vunpack.c.0.s8 %v1040
        %v1042 = vperm.slane %v1036, %v1041
        %v1044 = vunpack.c.l.s4 1934713408
        %v1045 = vunpack.c.0.s8 %v1044
        %v1046 = vperm.slane %v1038, %v1045
        %v1047 = vrot.slane %v1034, 4
        %v1048 = vsel %vm957, %v1047, %v1028
        %v1049 = vrot.slane %v1028, 4
        %v1050 = vsel %vm957, %v1034, %v1049
        %v1052 = vunpack.c.l.s4 1934713408
        %v1053 = vunpack.c.0.s8 %v1052
        %v1054 = vperm.slane %v1048, %v1053
        %v1056 = vunpack.c.l.s4 1934713408
        %v1057 = vunpack.c.0.s8 %v1056
        %v1058 = vperm.slane %v1050, %v1057
        %v1059 = vrot.slane %v1054, 4
        %v1060 = vsel %vm957, %v1059, %v1042
        %v1061 = vrot.slane %v1042, 4
        %v1062 = vsel %vm957, %v1054, %v1061
        %v1063 = vrot.slane %v1058, 4
        %v1064 = vsel %vm957, %v1063, %v1046
        %v1065 = vrot.slane %v1046, 4
        %v1066 = vsel %vm957, %v1058, %v1065
        %v1067 = vpack.c.bf16 %v1060, %v1060
        %v1068 = vpack.c.bf16 %v1062, %v1062
        %v1069 = vpack.c.bf16 %v1064, %v1064
        %v1070 = vpack.c.bf16 %v1066, %v1066
        %1072 = vrot.lane.b32.xlu0 %v912, 120
        %v1073 = vpop.permute.xlu0 %1072
        %1075 = vrot.lane.b32.xlu0 %v912, 112
        %v1076 = vpop.permute.xlu0 %1075
        %1078 = vrot.lane.b32.xlu0 %v912, 104
        %v1079 = vpop.permute.xlu0 %1078
        %v1081 = vrot.slane %v1076, 4
        %v1082 = vsel %vm957, %v1081, %v912
        %v1083 = vrot.slane %v912, 4
        %v1084 = vsel %vm957, %v1076, %v1083
        %v1086 = vunpack.c.l.s4 1983009808
        %v1087 = vunpack.c.0.s8 %v1086
        %v1088 = vperm.slane %v1082, %v1087
        %v1090 = vunpack.c.l.s4 1983009808
        %v1091 = vunpack.c.0.s8 %v1090
        %v1092 = vperm.slane %v1084, %v1091
        %v1093 = vrot.slane %v1079, 4
        %v1094 = vsel %vm957, %v1093, %v1073
        %v1095 = vrot.slane %v1073, 4
        %v1096 = vsel %vm957, %v1079, %v1095
        %v1098 = vunpack.c.l.s4 1983009808
        %v1099 = vunpack.c.0.s8 %v1098
        %v1100 = vperm.slane %v1094, %v1099
        %v1102 = vunpack.c.l.s4 1983009808
        %v1103 = vunpack.c.0.s8 %v1102
        %v1104 = vperm.slane %v1096, %v1103
        %v1105 = vrot.slane %v1100, 4
        %v1106 = vsel %vm957, %v1105, %v1088
        %v1107 = vrot.slane %v1088, 4
        %v1108 = vsel %vm957, %v1100, %v1107
        %v1110 = vunpack.c.l.s4 1934713408
        %v1111 = vunpack.c.0.s8 %v1110
        %v1112 = vperm.slane %v1106, %v1111
        %v1114 = vunpack.c.l.s4 1934713408
        %v1115 = vunpack.c.0.s8 %v1114
        %v1116 = vperm.slane %v1108, %v1115
        %v1117 = vrot.slane %v1104, 4
        %v1118 = vsel %vm957, %v1117, %v1092
        %v1119 = vrot.slane %v1092, 4
        %v1120 = vsel %vm957, %v1104, %v1119
        %v1122 = vunpack.c.l.s4 1934713408
        %v1123 = vunpack.c.0.s8 %v1122
        %v1124 = vperm.slane %v1118, %v1123
        %v1126 = vunpack.c.l.s4 1934713408
        %v1127 = vunpack.c.0.s8 %v1126
        %v1128 = vperm.slane %v1120, %v1127
        %v1129 = vrot.slane %v1112, 4
        %v1130 = vsel %vm957, 0.0, %v1129
        %v1131 = vrot.slane %v1116, 4
        %v1132 = vsel %vm957, 0.0, %v1131
        %v1133 = vrot.slane %v1124, 4
        %v1134 = vsel %vm957, 0.0, %v1133
        %v1135 = vrot.slane %v1128, 4
        %v1136 = vsel %vm957, 0.0, %v1135
        %v1137 = vsel %vm957, %v1131, %v1112
        %v1139 = vunpack.c.l.s4 1983009808
        %v1140 = vunpack.c.0.s8 %v1139
        %v1141 = vperm.slane %v1137, %v1140
        %v1142 = vrot.slane %v1132, 4
        %v1143 = vsel %vm957, %v1142, %v1130
        %v1145 = vunpack.c.l.s4 1983009808
        %v1146 = vunpack.c.0.s8 %v1145
        %v1147 = vperm.slane %v1143, %v1146
        %v1148 = vsel %vm957, %v1135, %v1124
        %v1150 = vunpack.c.l.s4 1983009808
        %v1151 = vunpack.c.0.s8 %v1150
        %v1152 = vperm.slane %v1148, %v1151
        %v1153 = vrot.slane %v1136, 4
        %v1154 = vsel %vm957, %v1153, %v1134
        %v1156 = vunpack.c.l.s4 1983009808
        %v1157 = vunpack.c.0.s8 %v1156
        %v1158 = vperm.slane %v1154, %v1157
        %v1159 = vrot.slane %v1147, 4
        %v1160 = vsel %vm957, %v1159, %v1141
        %v1161 = vrot.slane %v1141, 4
        %v1162 = vsel %vm957, %v1147, %v1161
        %v1164 = vunpack.c.l.s4 1934713408
        %v1165 = vunpack.c.0.s8 %v1164
        %v1166 = vperm.slane %v1160, %v1165
        %v1168 = vunpack.c.l.s4 1934713408
        %v1169 = vunpack.c.0.s8 %v1168
        %v1170 = vperm.slane %v1162, %v1169
        %v1171 = vrot.slane %v1158, 4
        %v1172 = vsel %vm957, %v1171, %v1152
        %v1173 = vrot.slane %v1152, 4
        %v1174 = vsel %vm957, %v1158, %v1173
        %v1176 = vunpack.c.l.s4 1934713408
        %v1177 = vunpack.c.0.s8 %v1176
        %v1178 = vperm.slane %v1172, %v1177
        %v1180 = vunpack.c.l.s4 1934713408
        %v1181 = vunpack.c.0.s8 %v1180
        %v1182 = vperm.slane %v1174, %v1181
        %v1183 = vrot.slane %v1178, 4
        %v1184 = vsel %vm957, %v1183, %v1166
        %v1185 = vrot.slane %v1166, 4
        %v1186 = vsel %vm957, %v1178, %v1185
        %v1187 = vrot.slane %v1182, 4
        %v1188 = vsel %vm957, %v1187, %v1170
        %v1189 = vrot.slane %v1170, 4
        %v1190 = vsel %vm957, %v1182, %v1189
        %v1191 = vpack.c.bf16 %v1184, %v1184
        %v1192 = vpack.c.bf16 %v1186, %v1186
        %v1193 = vpack.c.bf16 %v1188, %v1188
        %v1194 = vpack.c.bf16 %v1190, %v1190
        %1196 = vrot.lane.b32.xlu0 %v942, 120
        %v1197 = vpop.permute.xlu0 %1196
        %1199 = vrot.lane.b32.xlu0 %v942, 112
        %v1200 = vpop.permute.xlu0 %1199
        %1202 = vrot.lane.b32.xlu0 %v942, 104
        %v1203 = vpop.permute.xlu0 %1202
        %v1205 = vrot.slane %v1200, 4
        %v1206 = vsel %vm957, %v1205, %v942
        %v1207 = vrot.slane %v942, 4
        %v1208 = vsel %vm957, %v1200, %v1207
        %v1210 = vunpack.c.l.s4 1983009808
        %v1211 = vunpack.c.0.s8 %v1210
        %v1212 = vperm.slane %v1206, %v1211
        %v1214 = vunpack.c.l.s4 1983009808
        %v1215 = vunpack.c.0.s8 %v1214
        %v1216 = vperm.slane %v1208, %v1215
        %v1217 = vrot.slane %v1203, 4
        %v1218 = vsel %vm957, %v1217, %v1197
        %v1219 = vrot.slane %v1197, 4
        %v1220 = vsel %vm957, %v1203, %v1219
        %v1222 = vunpack.c.l.s4 1983009808
        %v1223 = vunpack.c.0.s8 %v1222
        %v1224 = vperm.slane %v1218, %v1223
        %v1226 = vunpack.c.l.s4 1983009808
        %v1227 = vunpack.c.0.s8 %v1226
        %v1228 = vperm.slane %v1220, %v1227
        %v1229 = vrot.slane %v1224, 4
        %v1230 = vsel %vm957, %v1229, %v1212
        %v1231 = vrot.slane %v1212, 4
        %v1232 = vsel %vm957, %v1224, %v1231
        %v1234 = vunpack.c.l.s4 1934713408
        %v1235 = vunpack.c.0.s8 %v1234
        %v1236 = vperm.slane %v1230, %v1235
        %v1238 = vunpack.c.l.s4 1934713408
        %v1239 = vunpack.c.0.s8 %v1238
        %v1240 = vperm.slane %v1232, %v1239
        %v1241 = vrot.slane %v1228, 4
        %v1242 = vsel %vm957, %v1241, %v1216
        %v1243 = vrot.slane %v1216, 4
        %v1244 = vsel %vm957, %v1228, %v1243
        %v1246 = vunpack.c.l.s4 1934713408
        %v1247 = vunpack.c.0.s8 %v1246
        %v1248 = vperm.slane %v1242, %v1247
        %v1250 = vunpack.c.l.s4 1934713408
        %v1251 = vunpack.c.0.s8 %v1250
        %v1252 = vperm.slane %v1244, %v1251
        %v1253 = vrot.slane %v1236, 4
        %v1254 = vsel %vm957, 0.0, %v1253
        %v1255 = vrot.slane %v1240, 4
        %v1256 = vsel %vm957, 0.0, %v1255
        %v1257 = vrot.slane %v1248, 4
        %v1258 = vsel %vm957, 0.0, %v1257
        %v1259 = vrot.slane %v1252, 4
        %v1260 = vsel %vm957, 0.0, %v1259
        %v1261 = vsel %vm957, %v1255, %v1236
        %v1263 = vunpack.c.l.s4 1983009808
        %v1264 = vunpack.c.0.s8 %v1263
        %v1265 = vperm.slane %v1261, %v1264
        %v1266 = vrot.slane %v1256, 4
        %v1267 = vsel %vm957, %v1266, %v1254
        %v1269 = vunpack.c.l.s4 1983009808
        %v1270 = vunpack.c.0.s8 %v1269
        %v1271 = vperm.slane %v1267, %v1270
        %v1272 = vsel %vm957, %v1259, %v1248
        %v1274 = vunpack.c.l.s4 1983009808
        %v1275 = vunpack.c.0.s8 %v1274
        %v1276 = vperm.slane %v1272, %v1275
        %v1277 = vrot.slane %v1260, 4
        %v1278 = vsel %vm957, %v1277, %v1258
        %v1280 = vunpack.c.l.s4 1983009808
        %v1281 = vunpack.c.0.s8 %v1280
        %v1282 = vperm.slane %v1278, %v1281
        %v1283 = vrot.slane %v1271, 4
        %v1284 = vsel %vm957, %v1283, %v1265
        %v1285 = vrot.slane %v1265, 4
        %v1286 = vsel %vm957, %v1271, %v1285
        %v1288 = vunpack.c.l.s4 1934713408
        %v1289 = vunpack.c.0.s8 %v1288
        %v1290 = vperm.slane %v1284, %v1289
        %v1292 = vunpack.c.l.s4 1934713408
        %v1293 = vunpack.c.0.s8 %v1292
        %v1294 = vperm.slane %v1286, %v1293
        %v1295 = vrot.slane %v1282, 4
        %v1296 = vsel %vm957, %v1295, %v1276
        %v1297 = vrot.slane %v1276, 4
        %v1298 = vsel %vm957, %v1282, %v1297
        %v1300 = vunpack.c.l.s4 1934713408
        %v1301 = vunpack.c.0.s8 %v1300
        %v1302 = vperm.slane %v1296, %v1301
        %v1304 = vunpack.c.l.s4 1934713408
        %v1305 = vunpack.c.0.s8 %v1304
        %v1306 = vperm.slane %v1298, %v1305
        %v1307 = vrot.slane %v1302, 4
        %v1308 = vsel %vm957, %v1307, %v1290
        %v1309 = vrot.slane %v1290, 4
        %v1310 = vsel %vm957, %v1302, %v1309
        %v1311 = vrot.slane %v1306, 4
        %v1312 = vsel %vm957, %v1311, %v1294
        %v1313 = vrot.slane %v1294, 4
        %v1314 = vsel %vm957, %v1306, %v1313
        %v1315 = vpack.c.bf16 %v1308, %v1308
        %v1316 = vpack.c.bf16 %v1310, %v1310
        %v1317 = vpack.c.bf16 %v1312, %v1312
        %v1318 = vpack.c.bf16 %v1314, %v1314
        %vm1319 = vcmask 64512
        %v1321 = vsel %vm1319, %v1067, 0
        %v1324 = vsel %vm1319, %v1191, 0
        %1326 = vmatpush.bf16.xpose.msra.mxu0 0
        %1327 = vmatpush.bf16.xpose.msra.mxu0 0
        %1328 = vmatpush.bf16.xpose.msra.mxu0 0
        %1329 = vmatpush.bf16.xpose.msra.mxu0 0
        %1330 = vmatpush.bf16.xpose.msra.mxu0 0
        %1331 = vmatpush.bf16.xpose.msra.mxu0 0
        %1332 = vmatpush.bf16.xpose.msra.mxu0 0
        %1333 = vmatpush.bf16.xpose.msra.mxu0 %v1324
        %1334 = vmatmul.bf16.gmra.mxu0 %v1321
        %v1335 = vpop.f32.mrf.mxu0
        %v1336 = vadd.f32 0.0, %v1335
        %v1337 = vpop.f32.mrf.mxu0
        %1338 = vdwg.mxu0
        %v1340 = vsel %vm1319, %v1068, 0
        %v1343 = vsel %vm1319, %v1192, 0
        %1345 = vmatpush.bf16.xpose.msra.mxu0 0
        %1346 = vmatpush.bf16.xpose.msra.mxu0 0
        %1347 = vmatpush.bf16.xpose.msra.mxu0 0
        %1348 = vmatpush.bf16.xpose.msra.mxu0 0
        %1349 = vmatpush.bf16.xpose.msra.mxu0 0
        %1350 = vmatpush.bf16.xpose.msra.mxu0 0
        %1351 = vmatpush.bf16.xpose.msra.mxu0 0
        %1352 = vmatpush.bf16.xpose.msra.mxu0 %v1343
        %1353 = vmatmul.bf16.gmra.mxu0 %v1340
        %v1354 = vpop.f32.mrf.mxu0
        %v1355 = vadd.f32 0.0, %v1354
        %v1356 = vpop.f32.mrf.mxu0
        %1357 = vdwg.mxu0
        %v1359 = vsel %vm1319, %v1069, 0
        %v1362 = vsel %vm1319, %v1193, 0
        %1364 = vmatpush.bf16.xpose.msra.mxu0 0
        %1365 = vmatpush.bf16.xpose.msra.mxu0 0
        %1366 = vmatpush.bf16.xpose.msra.mxu0 0
        %1367 = vmatpush.bf16.xpose.msra.mxu0 0
        %1368 = vmatpush.bf16.xpose.msra.mxu0 0
        %1369 = vmatpush.bf16.xpose.msra.mxu0 0
        %1370 = vmatpush.bf16.xpose.msra.mxu0 0
        %1371 = vmatpush.bf16.xpose.msra.mxu0 %v1362
        %1372 = vmatmul.bf16.gmra.mxu0 %v1359
        %v1373 = vpop.f32.mrf.mxu0
        %v1374 = vadd.f32 0.0, %v1373
        %v1375 = vpop.f32.mrf.mxu0
        %1376 = vdwg.mxu0
        %v1378 = vsel %vm1319, %v1070, 0
        %v1381 = vsel %vm1319, %v1194, 0
        %1383 = vmatpush.bf16.xpose.msra.mxu0 0
        %1384 = vmatpush.bf16.xpose.msra.mxu0 0
        %1385 = vmatpush.bf16.xpose.msra.mxu0 0
        %1386 = vmatpush.bf16.xpose.msra.mxu0 0
        %1387 = vmatpush.bf16.xpose.msra.mxu0 0
        %1388 = vmatpush.bf16.xpose.msra.mxu0 0
        %1389 = vmatpush.bf16.xpose.msra.mxu0 0
        %1390 = vmatpush.bf16.xpose.msra.mxu0 %v1381
        %1391 = vmatmul.bf16.gmra.mxu0 %v1378
        %v1392 = vpop.f32.mrf.mxu0
        %v1393 = vadd.f32 0.0, %v1392
        %v1394 = vpop.f32.mrf.mxu0
        %1395 = vdwg.mxu0
        %v1396 = vsel %vm1319, %v1336, -inf
        %1397 = vmax.xlane.f32.xlu0 %v1396
        %v1398 = vpop.xlane.xlu0 %1397
        %v1399 = vsel %vm1319, %v1355, -inf
        %1400 = vmax.xlane.f32.xlu0 %v1399
        %v1401 = vpop.xlane.xlu0 %1400
        %v1402 = vsel %vm1319, %v1374, -inf
        %1403 = vmax.xlane.f32.xlu0 %v1402
        %v1404 = vpop.xlane.xlu0 %1403
        %v1405 = vsel %vm1319, %v1393, -inf
        %1406 = vmax.xlane.f32.xlu0 %v1405
        %v1407 = vpop.xlane.xlu0 %1406
        %v1408 = vsub.f32 %v1336, %v1398
        %v1409 = vsub.f32 %v1355, %v1401
        %v1410 = vsub.f32 %v1374, %v1404
        %v1411 = vsub.f32 %v1393, %v1407
        %v1412 = vmul.f32 %v1408, 1.442695
        %v1413 = vpow.pop %v1412
        %v1414 = vmul.f32 %v1409, 1.442695
        %v1415 = vpow.pop %v1414
        %v1416 = vmul.f32 %v1410, 1.442695
        %v1417 = vpow.pop %v1416
        %v1418 = vmul.f32 %v1411, 1.442695
        %v1419 = vpow.pop %v1418
        %v1420 = vsel %vm1319, %v1413, 0.0
        %1421 = vadd.xlane.f32.xlu0 %v1420
        %v1422 = vpop.xlane.xlu0 %1421
        %v1423 = vsel %vm1319, %v1415, 0.0
        %1424 = vadd.xlane.f32.xlu0 %v1423
        %v1425 = vpop.xlane.xlu0 %1424
        %v1426 = vsel %vm1319, %v1417, 0.0
        %1427 = vadd.xlane.f32.xlu0 %v1426
        %v1428 = vpop.xlane.xlu0 %1427
        %v1429 = vsel %vm1319, %v1419, 0.0
        %1430 = vadd.xlane.f32.xlu0 %v1429
        %v1431 = vpop.xlane.xlu0 %1430
        %v1432 = vpack.c.bf16 %v1413, %v1413
        %v1433 = vpack.c.bf16 %v1415, %v1415
        %v1434 = vpack.c.bf16 %v1417, %v1417
        %v1435 = vpack.c.bf16 %v1419, %v1419
        %v1437 = vsel %vm1319, %v1432, 0
        %vm1439 = vcmask 1043456
        %v1441 = vsel %vm1439, %v1315, 0
        %1443 = vmatpush.bf16.msra.mxu0 0
        %1444 = vmatpush.bf16.msra.mxu0 0
        %1445 = vmatpush.bf16.msra.mxu0 0
        %1446 = vmatpush.bf16.msra.mxu0 0
        %1447 = vmatpush.bf16.msra.mxu0 0
        %1448 = vmatpush.bf16.msra.mxu0 0
        %1449 = vmatpush.bf16.msra.mxu0 0
        %1450 = vmatpush.bf16.msra.mxu0 %v1441
        %1451 = vmatmul.bf16.gmra.mxu0 %v1437
        %v1452 = vpop.f32.mrf.mxu0
        %v1453 = vadd.f32 0.0, %v1452
        %v1454 = vpop.f32.mrf.mxu0
        %1455 = vdwg.mxu0
        %v1457 = vsel %vm1319, %v1433, 0
        %v1460 = vsel %vm1439, %v1316, 0
        %1462 = vmatpush.bf16.msra.mxu0 0
        %1463 = vmatpush.bf16.msra.mxu0 0
        %1464 = vmatpush.bf16.msra.mxu0 0
        %1465 = vmatpush.bf16.msra.mxu0 0
        %1466 = vmatpush.bf16.msra.mxu0 0
        %1467 = vmatpush.bf16.msra.mxu0 0
        %1468 = vmatpush.bf16.msra.mxu0 0
        %1469 = vmatpush.bf16.msra.mxu0 %v1460
        %1470 = vmatmul.bf16.gmra.mxu0 %v1457
        %v1471 = vpop.f32.mrf.mxu0
        %v1472 = vadd.f32 0.0, %v1471
        %v1473 = vpop.f32.mrf.mxu0
        %1474 = vdwg.mxu0
        %v1476 = vsel %vm1319, %v1434, 0
        %v1479 = vsel %vm1439, %v1317, 0
        %1481 = vmatpush.bf16.msra.mxu0 0
        %1482 = vmatpush.bf16.msra.mxu0 0
        %1483 = vmatpush.bf16.msra.mxu0 0
        %1484 = vmatpush.bf16.msra.mxu0 0
        %1485 = vmatpush.bf16.msra.mxu0 0
        %1486 = vmatpush.bf16.msra.mxu0 0
        %1487 = vmatpush.bf16.msra.mxu0 0
        %1488 = vmatpush.bf16.msra.mxu0 %v1479
        %1489 = vmatmul.bf16.gmra.mxu0 %v1476
        %v1490 = vpop.f32.mrf.mxu0
        %v1491 = vadd.f32 0.0, %v1490
        %v1492 = vpop.f32.mrf.mxu0
        %1493 = vdwg.mxu0
        %v1495 = vsel %vm1319, %v1435, 0
        %v1498 = vsel %vm1439, %v1318, 0
        %1500 = vmatpush.bf16.msra.mxu0 0
        %1501 = vmatpush.bf16.msra.mxu0 0
        %1502 = vmatpush.bf16.msra.mxu0 0
        %1503 = vmatpush.bf16.msra.mxu0 0
        %1504 = vmatpush.bf16.msra.mxu0 0
        %1505 = vmatpush.bf16.msra.mxu0 0
        %1506 = vmatpush.bf16.msra.mxu0 0
        %1507 = vmatpush.bf16.msra.mxu0 %v1498
        %1508 = vmatmul.bf16.gmra.mxu0 %v1495
        %v1509 = vpop.f32.mrf.mxu0
        %v1510 = vadd.f32 0.0, %v1509
        %v1511 = vpop.f32.mrf.mxu0
        %1512 = vdwg.mxu0
        %v1513 = vrcp.pop %v1422
        %v1514 = vrcp.pop %v1425
        %v1515 = vrcp.pop %v1428
        %v1516 = vrcp.pop %v1431
        %v1517 = vmul.f32 %v1453, %v1513
        %v1518 = vmul.f32 %v1472, %v1514
        %v1519 = vmul.f32 %v1491, %v1515
        %v1520 = vmul.f32 %v1510, %v1516
        %v1521 = vrot.slane %v1519, 4
        %v1522 = vsel %vm957, %v1521, %v1517
        %v1523 = vrot.slane %v1517, 4
        %v1524 = vsel %vm957, %v1519, %v1523
        %v1526 = vunpack.c.l.s4 1983009808
        %v1527 = vunpack.c.0.s8 %v1526
        %v1528 = vperm.slane %v1522, %v1527
        %v1530 = vunpack.c.l.s4 1983009808
        %v1531 = vunpack.c.0.s8 %v1530
        %v1532 = vperm.slane %v1524, %v1531
        %v1533 = vrot.slane %v1520, 4
        %v1534 = vsel %vm957, %v1533, %v1518
        %v1535 = vrot.slane %v1518, 4
        %v1536 = vsel %vm957, %v1520, %v1535
        %v1538 = vunpack.c.l.s4 1983009808
        %v1539 = vunpack.c.0.s8 %v1538
        %v1540 = vperm.slane %v1534, %v1539
        %v1542 = vunpack.c.l.s4 1983009808
        %v1543 = vunpack.c.0.s8 %v1542
        %v1544 = vperm.slane %v1536, %v1543
        %v1545 = vrot.slane %v1540, 4
        %v1546 = vsel %vm957, %v1545, %v1528
        %v1547 = vrot.slane %v1528, 4
        %v1548 = vsel %vm957, %v1540, %v1547
        %v1550 = vunpack.c.l.s4 1934713408
        %v1551 = vunpack.c.0.s8 %v1550
        %v1552 = vperm.slane %v1546, %v1551
        %v1554 = vunpack.c.l.s4 1934713408
        %v1555 = vunpack.c.0.s8 %v1554
        %v1556 = vperm.slane %v1548, %v1555
        %v1557 = vrot.slane %v1544, 4
        %v1558 = vsel %vm957, %v1557, %v1532
        %v1559 = vrot.slane %v1532, 4
        %v1560 = vsel %vm957, %v1544, %v1559
        %v1562 = vunpack.c.l.s4 1934713408
        %v1563 = vunpack.c.0.s8 %v1562
        %v1564 = vperm.slane %v1558, %v1563
        %v1566 = vunpack.c.l.s4 1934713408
        %v1567 = vunpack.c.0.s8 %v1566
        %v1568 = vperm.slane %v1560, %v1567
        %v1569 = vrot.slane %v1552, 4
        %v1570 = vsel %vm957, 0.0, %v1569
        %v1571 = vrot.slane %v1556, 4
        %v1572 = vsel %vm957, 0.0, %v1571
        %v1573 = vrot.slane %v1564, 4
        %v1574 = vsel %vm957, 0.0, %v1573
        %v1575 = vrot.slane %v1568, 4
        %v1576 = vsel %vm957, 0.0, %v1575
        %v1577 = vsel %vm957, %v1571, %v1552
        %v1579 = vunpack.c.l.s4 1983009808
        %v1580 = vunpack.c.0.s8 %v1579
        %v1581 = vperm.slane %v1577, %v1580
        %v1582 = vrot.slane %v1572, 4
        %v1583 = vsel %vm957, %v1582, %v1570
        %v1585 = vunpack.c.l.s4 1983009808
        %v1586 = vunpack.c.0.s8 %v1585
        %v1587 = vperm.slane %v1583, %v1586
        %v1588 = vsel %vm957, %v1575, %v1564
        %v1590 = vunpack.c.l.s4 1983009808
        %v1591 = vunpack.c.0.s8 %v1590
        %v1592 = vperm.slane %v1588, %v1591
        %v1593 = vrot.slane %v1576, 4
        %v1594 = vsel %vm957, %v1593, %v1574
        %v1596 = vunpack.c.l.s4 1983009808
        %v1597 = vunpack.c.0.s8 %v1596
        %v1598 = vperm.slane %v1594, %v1597
        %v1599 = vrot.slane %v1587, 4
        %v1600 = vsel %vm957, %v1599, %v1581
        %v1601 = vrot.slane %v1581, 4
        %v1602 = vsel %vm957, %v1587, %v1601
        %v1604 = vunpack.c.l.s4 1934713408
        %v1605 = vunpack.c.0.s8 %v1604
        %v1606 = vperm.slane %v1600, %v1605
        %v1608 = vunpack.c.l.s4 1934713408
        %v1609 = vunpack.c.0.s8 %v1608
        %v1610 = vperm.slane %v1602, %v1609
        %v1611 = vrot.slane %v1598, 4
        %v1612 = vsel %vm957, %v1611, %v1592
        %v1613 = vrot.slane %v1592, 4
        %v1614 = vsel %vm957, %v1598, %v1613
        %v1616 = vunpack.c.l.s4 1934713408
        %v1617 = vunpack.c.0.s8 %v1616
        %v1618 = vperm.slane %v1612, %v1617
        %v1620 = vunpack.c.l.s4 1934713408
        %v1621 = vunpack.c.0.s8 %v1620
        %v1622 = vperm.slane %v1614, %v1621
        %v1623 = vrot.slane %v1618, 4
        %v1624 = vsel %vm957, %v1623, %v1606
        %v1625 = vrot.slane %v1606, 4
        %v1626 = vsel %vm957, %v1618, %v1625
        %v1627 = vrot.slane %v1622, 4
        %v1628 = vsel %vm957, %v1627, %v1610
        %v1629 = vrot.slane %v1610, 4
        %v1630 = vsel %vm957, %v1622, %v1629
        %1632 = vrot.lane.b32.xlu0 %v1626, 8
        %v1633 = vpop.permute.xlu0 %1632
        %1636 = vrot.lane.b32.xlu0 %v1628, 16
        %v1637 = vpop.permute.xlu0 %1636
        %1640 = vrot.lane.b32.xlu0 %v1630, 24
        %v1641 = vpop.permute.xlu0 %1640
        %v1643 = vsel %vm1319, %v1624, %v1633
        %vm1644 = vcmask 130048
        %v1645 = vsel %vm1644, %v1643, %v1637
        %vm1646 = vcmask 195584
        %v1647 = vsel %vm1646, %v1645, %v1641
        %1649 = vrot.lane.b32.xlu0 %v884, 120
        %v1650 = vpop.permute.xlu0 %1649
        %1652 = vrot.lane.b32.xlu0 %v884, 112
        %v1653 = vpop.permute.xlu0 %1652
        %1655 = vrot.lane.b32.xlu0 %v884, 104
        %v1656 = vpop.permute.xlu0 %1655
        %v1658 = vrot.slane %v1653, 4
        %v1659 = vsel %vm957, %v1658, %v884
        %v1660 = vrot.slane %v884, 4
        %v1661 = vsel %vm957, %v1653, %v1660
        %v1663 = vunpack.c.l.s4 1983009808
        %v1664 = vunpack.c.0.s8 %v1663
        %v1665 = vperm.slane %v1659, %v1664
        %v1667 = vunpack.c.l.s4 1983009808
        %v1668 = vunpack.c.0.s8 %v1667
        %v1669 = vperm.slane %v1661, %v1668
        %v1670 = vrot.slane %v1656, 4
        %v1671 = vsel %vm957, %v1670, %v1650
        %v1672 = vrot.slane %v1650, 4
        %v1673 = vsel %vm957, %v1656, %v1672
        %v1675 = vunpack.c.l.s4 1983009808
        %v1676 = vunpack.c.0.s8 %v1675
        %v1677 = vperm.slane %v1671, %v1676
        %v1679 = vunpack.c.l.s4 1983009808
        %v1680 = vunpack.c.0.s8 %v1679
        %v1681 = vperm.slane %v1673, %v1680
        %v1682 = vrot.slane %v1677, 4
        %v1683 = vsel %vm957, %v1682, %v1665
        %v1684 = vrot.slane %v1665, 4
        %v1685 = vsel %vm957, %v1677, %v1684
        %v1687 = vunpack.c.l.s4 1934713408
        %v1688 = vunpack.c.0.s8 %v1687
        %v1689 = vperm.slane %v1683, %v1688
        %v1691 = vunpack.c.l.s4 1934713408
        %v1692 = vunpack.c.0.s8 %v1691
        %v1693 = vperm.slane %v1685, %v1692
        %v1694 = vrot.slane %v1681, 4
        %v1695 = vsel %vm957, %v1694, %v1669
        %v1696 = vrot.slane %v1669, 4
        %v1697 = vsel %vm957, %v1681, %v1696
        %v1699 = vunpack.c.l.s4 1934713408
        %v1700 = vunpack.c.0.s8 %v1699
        %v1701 = vperm.slane %v1695, %v1700
        %v1703 = vunpack.c.l.s4 1934713408
        %v1704 = vunpack.c.0.s8 %v1703
        %v1705 = vperm.slane %v1697, %v1704
        %v1706 = vrot.slane %v1689, 4
        %v1707 = vsel %vm957, 0.0, %v1706
        %v1708 = vrot.slane %v1693, 4
        %v1709 = vsel %vm957, 0.0, %v1708
        %v1710 = vrot.slane %v1701, 4
        %v1711 = vsel %vm957, 0.0, %v1710
        %v1712 = vrot.slane %v1705, 4
        %v1713 = vsel %vm957, 0.0, %v1712
        %v1714 = vsel %vm957, %v1708, %v1689
        %v1716 = vunpack.c.l.s4 1983009808
        %v1717 = vunpack.c.0.s8 %v1716
        %v1718 = vperm.slane %v1714, %v1717
        %v1719 = vrot.slane %v1709, 4
        %v1720 = vsel %vm957, %v1719, %v1707
        %v1722 = vunpack.c.l.s4 1983009808
        %v1723 = vunpack.c.0.s8 %v1722
        %v1724 = vperm.slane %v1720, %v1723
        %v1725 = vsel %vm957, %v1712, %v1701
        %v1727 = vunpack.c.l.s4 1983009808
        %v1728 = vunpack.c.0.s8 %v1727
        %v1729 = vperm.slane %v1725, %v1728
        %v1730 = vrot.slane %v1713, 4
        %v1731 = vsel %vm957, %v1730, %v1711
        %v1733 = vunpack.c.l.s4 1983009808
        %v1734 = vunpack.c.0.s8 %v1733
        %v1735 = vperm.slane %v1731, %v1734
        %v1736 = vrot.slane %v1724, 4
        %v1737 = vsel %vm957, %v1736, %v1718
        %v1738 = vrot.slane %v1718, 4
        %v1739 = vsel %vm957, %v1724, %v1738
        %v1741 = vunpack.c.l.s4 1934713408
        %v1742 = vunpack.c.0.s8 %v1741
        %v1743 = vperm.slane %v1737, %v1742
        %v1745 = vunpack.c.l.s4 1934713408
        %v1746 = vunpack.c.0.s8 %v1745
        %v1747 = vperm.slane %v1739, %v1746
        %v1748 = vrot.slane %v1735, 4
        %v1749 = vsel %vm957, %v1748, %v1729
        %v1750 = vrot.slane %v1729, 4
        %v1751 = vsel %vm957, %v1735, %v1750
        %v1753 = vunpack.c.l.s4 1934713408
        %v1754 = vunpack.c.0.s8 %v1753
        %v1755 = vperm.slane %v1749, %v1754
        %v1757 = vunpack.c.l.s4 1934713408
        %v1758 = vunpack.c.0.s8 %v1757
        %v1759 = vperm.slane %v1751, %v1758
        %v1760 = vrot.slane %v1755, 4
        %v1761 = vsel %vm957, %v1760, %v1743
        %v1762 = vrot.slane %v1743, 4
        %v1763 = vsel %vm957, %v1755, %v1762
        %v1764 = vrot.slane %v1759, 4
        %v1765 = vsel %vm957, %v1764, %v1747
        %v1766 = vrot.slane %v1747, 4
        %v1767 = vsel %vm957, %v1759, %v1766
        %v1768 = vpack.c.bf16 %v1761, %v1761
        %v1769 = vpack.c.bf16 %v1763, %v1763
        %v1770 = vpack.c.bf16 %v1765, %v1765
        %v1771 = vpack.c.bf16 %v1767, %v1767
        %1773 = vrot.lane.b32.xlu0 %v914, 120
        %v1774 = vpop.permute.xlu0 %1773
        %1776 = vrot.lane.b32.xlu0 %v914, 112
        %v1777 = vpop.permute.xlu0 %1776
        %1779 = vrot.lane.b32.xlu0 %v914, 104
        %v1780 = vpop.permute.xlu0 %1779
        %v1782 = vrot.slane %v1777, 4
        %v1783 = vsel %vm957, %v1782, %v914
        %v1784 = vrot.slane %v914, 4
        %v1785 = vsel %vm957, %v1777, %v1784
        %v1787 = vunpack.c.l.s4 1983009808
        %v1788 = vunpack.c.0.s8 %v1787
        %v1789 = vperm.slane %v1783, %v1788
        %v1791 = vunpack.c.l.s4 1983009808
        %v1792 = vunpack.c.0.s8 %v1791
        %v1793 = vperm.slane %v1785, %v1792
        %v1794 = vrot.slane %v1780, 4
        %v1795 = vsel %vm957, %v1794, %v1774
        %v1796 = vrot.slane %v1774, 4
        %v1797 = vsel %vm957, %v1780, %v1796
        %v1799 = vunpack.c.l.s4 1983009808
        %v1800 = vunpack.c.0.s8 %v1799
        %v1801 = vperm.slane %v1795, %v1800
        %v1803 = vunpack.c.l.s4 1983009808
        %v1804 = vunpack.c.0.s8 %v1803
        %v1805 = vperm.slane %v1797, %v1804
        %v1806 = vrot.slane %v1801, 4
        %v1807 = vsel %vm957, %v1806, %v1789
        %v1808 = vrot.slane %v1789, 4
        %v1809 = vsel %vm957, %v1801, %v1808
        %v1811 = vunpack.c.l.s4 1934713408
        %v1812 = vunpack.c.0.s8 %v1811
        %v1813 = vperm.slane %v1807, %v1812
        %v1815 = vunpack.c.l.s4 1934713408
        %v1816 = vunpack.c.0.s8 %v1815
        %v1817 = vperm.slane %v1809, %v1816
        %v1818 = vrot.slane %v1805, 4
        %v1819 = vsel %vm957, %v1818, %v1793
        %v1820 = vrot.slane %v1793, 4
        %v1821 = vsel %vm957, %v1805, %v1820
        %v1823 = vunpack.c.l.s4 1934713408
        %v1824 = vunpack.c.0.s8 %v1823
        %v1825 = vperm.slane %v1819, %v1824
        %v1827 = vunpack.c.l.s4 1934713408
        %v1828 = vunpack.c.0.s8 %v1827
        %v1829 = vperm.slane %v1821, %v1828
        %v1830 = vrot.slane %v1813, 4
        %v1831 = vsel %vm957, 0.0, %v1830
        %v1832 = vrot.slane %v1817, 4
        %v1833 = vsel %vm957, 0.0, %v1832
        %v1834 = vrot.slane %v1825, 4
        %v1835 = vsel %vm957, 0.0, %v1834
        %v1836 = vrot.slane %v1829, 4
        %v1837 = vsel %vm957, 0.0, %v1836
        %v1838 = vsel %vm957, %v1832, %v1813
        %v1840 = vunpack.c.l.s4 1983009808
        %v1841 = vunpack.c.0.s8 %v1840
        %v1842 = vperm.slane %v1838, %v1841
        %v1843 = vrot.slane %v1833, 4
        %v1844 = vsel %vm957, %v1843, %v1831
        %v1846 = vunpack.c.l.s4 1983009808
        %v1847 = vunpack.c.0.s8 %v1846
        %v1848 = vperm.slane %v1844, %v1847
        %v1849 = vsel %vm957, %v1836, %v1825
        %v1851 = vunpack.c.l.s4 1983009808
        %v1852 = vunpack.c.0.s8 %v1851
        %v1853 = vperm.slane %v1849, %v1852
        %v1854 = vrot.slane %v1837, 4
        %v1855 = vsel %vm957, %v1854, %v1835
        %v1857 = vunpack.c.l.s4 1983009808
        %v1858 = vunpack.c.0.s8 %v1857
        %v1859 = vperm.slane %v1855, %v1858
        %v1860 = vrot.slane %v1848, 4
        %v1861 = vsel %vm957, %v1860, %v1842
        %v1862 = vrot.slane %v1842, 4
        %v1863 = vsel %vm957, %v1848, %v1862
        %v1865 = vunpack.c.l.s4 1934713408
        %v1866 = vunpack.c.0.s8 %v1865
        %v1867 = vperm.slane %v1861, %v1866
        %v1869 = vunpack.c.l.s4 1934713408
        %v1870 = vunpack.c.0.s8 %v1869
        %v1871 = vperm.slane %v1863, %v1870
        %v1872 = vrot.slane %v1859, 4
        %v1873 = vsel %vm957, %v1872, %v1853
        %v1874 = vrot.slane %v1853, 4
        %v1875 = vsel %vm957, %v1859, %v1874
        %v1877 = vunpack.c.l.s4 1934713408
        %v1878 = vunpack.c.0.s8 %v1877
        %v1879 = vperm.slane %v1873, %v1878
        %v1881 = vunpack.c.l.s4 1934713408
        %v1882 = vunpack.c.0.s8 %v1881
        %v1883 = vperm.slane %v1875, %v1882
        %v1884 = vrot.slane %v1879, 4
        %v1885 = vsel %vm957, %v1884, %v1867
        %v1886 = vrot.slane %v1867, 4
        %v1887 = vsel %vm957, %v1879, %v1886
        %v1888 = vrot.slane %v1883, 4
        %v1889 = vsel %vm957, %v1888, %v1871
        %v1890 = vrot.slane %v1871, 4
        %v1891 = vsel %vm957, %v1883, %v1890
        %v1892 = vpack.c.bf16 %v1885, %v1885
        %v1893 = vpack.c.bf16 %v1887, %v1887
        %v1894 = vpack.c.bf16 %v1889, %v1889
        %v1895 = vpack.c.bf16 %v1891, %v1891
        %1897 = vrot.lane.b32.xlu0 %v944, 120
        %v1898 = vpop.permute.xlu0 %1897
        %1900 = vrot.lane.b32.xlu0 %v944, 112
        %v1901 = vpop.permute.xlu0 %1900
        %1903 = vrot.lane.b32.xlu0 %v944, 104
        %v1904 = vpop.permute.xlu0 %1903
        %v1906 = vrot.slane %v1901, 4
        %v1907 = vsel %vm957, %v1906, %v944
        %v1908 = vrot.slane %v944, 4
        %v1909 = vsel %vm957, %v1901, %v1908
        %v1911 = vunpack.c.l.s4 1983009808
        %v1912 = vunpack.c.0.s8 %v1911
        %v1913 = vperm.slane %v1907, %v1912
        %v1915 = vunpack.c.l.s4 1983009808
        %v1916 = vunpack.c.0.s8 %v1915
        %v1917 = vperm.slane %v1909, %v1916
        %v1918 = vrot.slane %v1904, 4
        %v1919 = vsel %vm957, %v1918, %v1898
        %v1920 = vrot.slane %v1898, 4
        %v1921 = vsel %vm957, %v1904, %v1920
        %v1923 = vunpack.c.l.s4 1983009808
        %v1924 = vunpack.c.0.s8 %v1923
        %v1925 = vperm.slane %v1919, %v1924
        %v1927 = vunpack.c.l.s4 1983009808
        %v1928 = vunpack.c.0.s8 %v1927
        %v1929 = vperm.slane %v1921, %v1928
        %v1930 = vrot.slane %v1925, 4
        %v1931 = vsel %vm957, %v1930, %v1913
        %v1932 = vrot.slane %v1913, 4
        %v1933 = vsel %vm957, %v1925, %v1932
        %v1935 = vunpack.c.l.s4 1934713408
        %v1936 = vunpack.c.0.s8 %v1935
        %v1937 = vperm.slane %v1931, %v1936
        %v1939 = vunpack.c.l.s4 1934713408
        %v1940 = vunpack.c.0.s8 %v1939
        %v1941 = vperm.slane %v1933, %v1940
        %v1942 = vrot.slane %v1929, 4
        %v1943 = vsel %vm957, %v1942, %v1917
        %v1944 = vrot.slane %v1917, 4
        %v1945 = vsel %vm957, %v1929, %v1944
        %v1947 = vunpack.c.l.s4 1934713408
        %v1948 = vunpack.c.0.s8 %v1947
        %v1949 = vperm.slane %v1943, %v1948
        %v1951 = vunpack.c.l.s4 1934713408
        %v1952 = vunpack.c.0.s8 %v1951
        %v1953 = vperm.slane %v1945, %v1952
        %v1954 = vrot.slane %v1937, 4
        %v1955 = vsel %vm957, 0.0, %v1954
        %v1956 = vrot.slane %v1941, 4
        %v1957 = vsel %vm957, 0.0, %v1956
        %v1958 = vrot.slane %v1949, 4
        %v1959 = vsel %vm957, 0.0, %v1958
        %v1960 = vrot.slane %v1953, 4
        %v1961 = vsel %vm957, 0.0, %v1960
        %v1962 = vsel %vm957, %v1956, %v1937
        %v1964 = vunpack.c.l.s4 1983009808
        %v1965 = vunpack.c.0.s8 %v1964
        %v1966 = vperm.slane %v1962, %v1965
        %v1967 = vrot.slane %v1957, 4
        %v1968 = vsel %vm957, %v1967, %v1955
        %v1970 = vunpack.c.l.s4 1983009808
        %v1971 = vunpack.c.0.s8 %v1970
        %v1972 = vperm.slane %v1968, %v1971
        %v1973 = vsel %vm957, %v1960, %v1949
        %v1975 = vunpack.c.l.s4 1983009808
        %v1976 = vunpack.c.0.s8 %v1975
        %v1977 = vperm.slane %v1973, %v1976
        %v1978 = vrot.slane %v1961, 4
        %v1979 = vsel %vm957, %v1978, %v1959
        %v1981 = vunpack.c.l.s4 1983009808
        %v1982 = vunpack.c.0.s8 %v1981
        %v1983 = vperm.slane %v1979, %v1982
        %v1984 = vrot.slane %v1972, 4
        %v1985 = vsel %vm957, %v1984, %v1966
        %v1986 = vrot.slane %v1966, 4
        %v1987 = vsel %vm957, %v1972, %v1986
        %v1989 = vunpack.c.l.s4 1934713408
        %v1990 = vunpack.c.0.s8 %v1989
        %v1991 = vperm.slane %v1985, %v1990
        %v1993 = vunpack.c.l.s4 1934713408
        %v1994 = vunpack.c.0.s8 %v1993
        %v1995 = vperm.slane %v1987, %v1994
        %v1996 = vrot.slane %v1983, 4
        %v1997 = vsel %vm957, %v1996, %v1977
        %v1998 = vrot.slane %v1977, 4
        %v1999 = vsel %vm957, %v1983, %v1998
        %v2001 = vunpack.c.l.s4 1934713408
        %v2002 = vunpack.c.0.s8 %v2001
        %v2003 = vperm.slane %v1997, %v2002
        %v2005 = vunpack.c.l.s4 1934713408
        %v2006 = vunpack.c.0.s8 %v2005
        %v2007 = vperm.slane %v1999, %v2006
        %v2008 = vrot.slane %v2003, 4
        %v2009 = vsel %vm957, %v2008, %v1991
        %v2010 = vrot.slane %v1991, 4
        %v2011 = vsel %vm957, %v2003, %v2010
        %v2012 = vrot.slane %v2007, 4
        %v2013 = vsel %vm957, %v2012, %v1995
        %v2014 = vrot.slane %v1995, 4
        %v2015 = vsel %vm957, %v2007, %v2014
        %v2016 = vpack.c.bf16 %v2009, %v2009
        %v2017 = vpack.c.bf16 %v2011, %v2011
        %v2018 = vpack.c.bf16 %v2013, %v2013
        %v2019 = vpack.c.bf16 %v2015, %v2015
        %v2021 = vsel %vm1319, %v1768, 0
        %v2024 = vsel %vm1319, %v1892, 0
        %2026 = vmatpush.bf16.xpose.msra.mxu0 0
        %2027 = vmatpush.bf16.xpose.msra.mxu0 0
        %2028 = vmatpush.bf16.xpose.msra.mxu0 0
        %2029 = vmatpush.bf16.xpose.msra.mxu0 0
        %2030 = vmatpush.bf16.xpose.msra.mxu0 0
        %2031 = vmatpush.bf16.xpose.msra.mxu0 0
        %2032 = vmatpush.bf16.xpose.msra.mxu0 0
        %2033 = vmatpush.bf16.xpose.msra.mxu0 %v2024
        %2034 = vmatmul.bf16.gmra.mxu0 %v2021
        %v2035 = vpop.f32.mrf.mxu0
        %v2036 = vadd.f32 0.0, %v2035
        %v2037 = vpop.f32.mrf.mxu0
        %2038 = vdwg.mxu0
        %v2040 = vsel %vm1319, %v1769, 0
        %v2043 = vsel %vm1319, %v1893, 0
        %2045 = vmatpush.bf16.xpose.msra.mxu0 0
        %2046 = vmatpush.bf16.xpose.msra.mxu0 0
        %2047 = vmatpush.bf16.xpose.msra.mxu0 0
        %2048 = vmatpush.bf16.xpose.msra.mxu0 0
        %2049 = vmatpush.bf16.xpose.msra.mxu0 0
        %2050 = vmatpush.bf16.xpose.msra.mxu0 0
        %2051 = vmatpush.bf16.xpose.msra.mxu0 0
        %2052 = vmatpush.bf16.xpose.msra.mxu0 %v2043
        %2053 = vmatmul.bf16.gmra.mxu0 %v2040
        %v2054 = vpop.f32.mrf.mxu0
        %v2055 = vadd.f32 0.0, %v2054
        %v2056 = vpop.f32.mrf.mxu0
        %2057 = vdwg.mxu0
        %v2059 = vsel %vm1319, %v1770, 0
        %v2062 = vsel %vm1319, %v1894, 0
        %2064 = vmatpush.bf16.xpose.msra.mxu0 0
        %2065 = vmatpush.bf16.xpose.msra.mxu0 0
        %2066 = vmatpush.bf16.xpose.msra.mxu0 0
        %2067 = vmatpush.bf16.xpose.msra.mxu0 0
        %2068 = vmatpush.bf16.xpose.msra.mxu0 0
        %2069 = vmatpush.bf16.xpose.msra.mxu0 0
        %2070 = vmatpush.bf16.xpose.msra.mxu0 0
        %2071 = vmatpush.bf16.xpose.msra.mxu0 %v2062
        %2072 = vmatmul.bf16.gmra.mxu0 %v2059
        %v2073 = vpop.f32.mrf.mxu0
        %v2074 = vadd.f32 0.0, %v2073
        %v2075 = vpop.f32.mrf.mxu0
        %2076 = vdwg.mxu0
        %v2078 = vsel %vm1319, %v1771, 0
        %v2081 = vsel %vm1319, %v1895, 0
        %2083 = vmatpush.bf16.xpose.msra.mxu0 0
        %2084 = vmatpush.bf16.xpose.msra.mxu0 0
        %2085 = vmatpush.bf16.xpose.msra.mxu0 0
        %2086 = vmatpush.bf16.xpose.msra.mxu0 0
        %2087 = vmatpush.bf16.xpose.msra.mxu0 0
        %2088 = vmatpush.bf16.xpose.msra.mxu0 0
        %2089 = vmatpush.bf16.xpose.msra.mxu0 0
        %2090 = vmatpush.bf16.xpose.msra.mxu0 %v2081
        %2091 = vmatmul.bf16.gmra.mxu0 %v2078
        %v2092 = vpop.f32.mrf.mxu0
        %v2093 = vadd.f32 0.0, %v2092
        %v2094 = vpop.f32.mrf.mxu0
        %2095 = vdwg.mxu0
        %v2096 = vsel %vm1319, %v2036, -inf
        %2097 = vmax.xlane.f32.xlu0 %v2096
        %v2098 = vpop.xlane.xlu0 %2097
        %v2099 = vsel %vm1319, %v2055, -inf
        %2100 = vmax.xlane.f32.xlu0 %v2099
        %v2101 = vpop.xlane.xlu0 %2100
        %v2102 = vsel %vm1319, %v2074, -inf
        %2103 = vmax.xlane.f32.xlu0 %v2102
        %v2104 = vpop.xlane.xlu0 %2103
        %v2105 = vsel %vm1319, %v2093, -inf
        %2106 = vmax.xlane.f32.xlu0 %v2105
        %v2107 = vpop.xlane.xlu0 %2106
        %v2108 = vsub.f32 %v2036, %v2098
        %v2109 = vsub.f32 %v2055, %v2101
        %v2110 = vsub.f32 %v2074, %v2104
        %v2111 = vsub.f32 %v2093, %v2107
        %v2112 = vmul.f32 %v2108, 1.442695
        %v2113 = vpow.pop %v2112
        %v2114 = vmul.f32 %v2109, 1.442695
        %v2115 = vpow.pop %v2114
        %v2116 = vmul.f32 %v2110, 1.442695
        %v2117 = vpow.pop %v2116
        %v2118 = vmul.f32 %v2111, 1.442695
        %v2119 = vpow.pop %v2118
        %v2120 = vsel %vm1319, %v2113, 0.0
        %2121 = vadd.xlane.f32.xlu0 %v2120
        %v2122 = vpop.xlane.xlu0 %2121
        %v2123 = vsel %vm1319, %v2115, 0.0
        %2124 = vadd.xlane.f32.xlu0 %v2123
        %v2125 = vpop.xlane.xlu0 %2124
        %v2126 = vsel %vm1319, %v2117, 0.0
        %2127 = vadd.xlane.f32.xlu0 %v2126
        %v2128 = vpop.xlane.xlu0 %2127
        %v2129 = vsel %vm1319, %v2119, 0.0
        %2130 = vadd.xlane.f32.xlu0 %v2129
        %v2131 = vpop.xlane.xlu0 %2130
        %v2132 = vpack.c.bf16 %v2113, %v2113
        %v2133 = vpack.c.bf16 %v2115, %v2115
        %v2134 = vpack.c.bf16 %v2117, %v2117
        %v2135 = vpack.c.bf16 %v2119, %v2119
        %v2137 = vsel %vm1319, %v2132, 0
        %v2140 = vsel %vm1439, %v2016, 0
        %2142 = vmatpush.bf16.msra.mxu0 0
        %2143 = vmatpush.bf16.msra.mxu0 0
        %2144 = vmatpush.bf16.msra.mxu0 0
        %2145 = vmatpush.bf16.msra.mxu0 0
        %2146 = vmatpush.bf16.msra.mxu0 0
        %2147 = vmatpush.bf16.msra.mxu0 0
        %2148 = vmatpush.bf16.msra.mxu0 0
        %2149 = vmatpush.bf16.msra.mxu0 %v2140
        %2150 = vmatmul.bf16.gmra.mxu0 %v2137
        %v2151 = vpop.f32.mrf.mxu0
        %v2152 = vadd.f32 0.0, %v2151
        %v2153 = vpop.f32.mrf.mxu0
        %2154 = vdwg.mxu0
        %v2156 = vsel %vm1319, %v2133, 0
        %v2159 = vsel %vm1439, %v2017, 0
        %2161 = vmatpush.bf16.msra.mxu0 0
        %2162 = vmatpush.bf16.msra.mxu0 0
        %2163 = vmatpush.bf16.msra.mxu0 0
        %2164 = vmatpush.bf16.msra.mxu0 0
        %2165 = vmatpush.bf16.msra.mxu0 0
        %2166 = vmatpush.bf16.msra.mxu0 0
        %2167 = vmatpush.bf16.msra.mxu0 0
        %2168 = vmatpush.bf16.msra.mxu0 %v2159
        %2169 = vmatmul.bf16.gmra.mxu0 %v2156
        %v2170 = vpop.f32.mrf.mxu0
        %v2171 = vadd.f32 0.0, %v2170
        %v2172 = vpop.f32.mrf.mxu0
        %2173 = vdwg.mxu0
        %v2175 = vsel %vm1319, %v2134, 0
        %v2178 = vsel %vm1439, %v2018, 0
        %2180 = vmatpush.bf16.msra.mxu0 0
        %2181 = vmatpush.bf16.msra.mxu0 0
        %2182 = vmatpush.bf16.msra.mxu0 0
        %2183 = vmatpush.bf16.msra.mxu0 0
        %2184 = vmatpush.bf16.msra.mxu0 0
        %2185 = vmatpush.bf16.msra.mxu0 0
        %2186 = vmatpush.bf16.msra.mxu0 0
        %2187 = vmatpush.bf16.msra.mxu0 %v2178
        %2188 = vmatmul.bf16.gmra.mxu0 %v2175
        %v2189 = vpop.f32.mrf.mxu0
        %v2190 = vadd.f32 0.0, %v2189
        %v2191 = vpop.f32.mrf.mxu0
        %2192 = vdwg.mxu0
        %v2194 = vsel %vm1319, %v2135, 0
        %v2197 = vsel %vm1439, %v2019, 0
        %2199 = vmatpush.bf16.msra.mxu0 0
        %2200 = vmatpush.bf16.msra.mxu0 0
        %2201 = vmatpush.bf16.msra.mxu0 0
        %2202 = vmatpush.bf16.msra.mxu0 0
        %2203 = vmatpush.bf16.msra.mxu0 0
        %2204 = vmatpush.bf16.msra.mxu0 0
        %2205 = vmatpush.bf16.msra.mxu0 0
        %2206 = vmatpush.bf16.msra.mxu0 %v2197
        %2207 = vmatmul.bf16.gmra.mxu0 %v2194
        %v2208 = vpop.f32.mrf.mxu0
        %v2209 = vadd.f32 0.0, %v2208
        %v2210 = vpop.f32.mrf.mxu0
        %2211 = vdwg.mxu0
        %v2212 = vrcp.pop %v2122
        %v2213 = vrcp.pop %v2125
        %v2214 = vrcp.pop %v2128
        %v2215 = vrcp.pop %v2131
        %v2216 = vmul.f32 %v2152, %v2212
        %v2217 = vmul.f32 %v2171, %v2213
        %v2218 = vmul.f32 %v2190, %v2214
        %v2219 = vmul.f32 %v2209, %v2215
        %v2220 = vrot.slane %v2218, 4
        %v2221 = vsel %vm957, %v2220, %v2216
        %v2222 = vrot.slane %v2216, 4
        %v2223 = vsel %vm957, %v2218, %v2222
        %v2225 = vunpack.c.l.s4 1983009808
        %v2226 = vunpack.c.0.s8 %v2225
        %v2227 = vperm.slane %v2221, %v2226
        %v2229 = vunpack.c.l.s4 1983009808
        %v2230 = vunpack.c.0.s8 %v2229
        %v2231 = vperm.slane %v2223, %v2230
        %v2232 = vrot.slane %v2219, 4
        %v2233 = vsel %vm957, %v2232, %v2217
        %v2234 = vrot.slane %v2217, 4
        %v2235 = vsel %vm957, %v2219, %v2234
        %v2237 = vunpack.c.l.s4 1983009808
        %v2238 = vunpack.c.0.s8 %v2237
        %v2239 = vperm.slane %v2233, %v2238
        %v2241 = vunpack.c.l.s4 1983009808
        %v2242 = vunpack.c.0.s8 %v2241
        %v2243 = vperm.slane %v2235, %v2242
        %v2244 = vrot.slane %v2239, 4
        %v2245 = vsel %vm957, %v2244, %v2227
        %v2246 = vrot.slane %v2227, 4
        %v2247 = vsel %vm957, %v2239, %v2246
        %v2249 = vunpack.c.l.s4 1934713408
        %v2250 = vunpack.c.0.s8 %v2249
        %v2251 = vperm.slane %v2245, %v2250
        %v2253 = vunpack.c.l.s4 1934713408
        %v2254 = vunpack.c.0.s8 %v2253
        %v2255 = vperm.slane %v2247, %v2254
        %v2256 = vrot.slane %v2243, 4
        %v2257 = vsel %vm957, %v2256, %v2231
        %v2258 = vrot.slane %v2231, 4
        %v2259 = vsel %vm957, %v2243, %v2258
        %v2261 = vunpack.c.l.s4 1934713408
        %v2262 = vunpack.c.0.s8 %v2261
        %v2263 = vperm.slane %v2257, %v2262
        %v2265 = vunpack.c.l.s4 1934713408
        %v2266 = vunpack.c.0.s8 %v2265
        %v2267 = vperm.slane %v2259, %v2266
        %v2268 = vrot.slane %v2251, 4
        %v2269 = vsel %vm957, 0.0, %v2268
        %v2270 = vrot.slane %v2255, 4
        %v2271 = vsel %vm957, 0.0, %v2270
        %v2272 = vrot.slane %v2263, 4
        %v2273 = vsel %vm957, 0.0, %v2272
        %v2274 = vrot.slane %v2267, 4
        %v2275 = vsel %vm957, 0.0, %v2274
        %v2276 = vsel %vm957, %v2270, %v2251
        %v2278 = vunpack.c.l.s4 1983009808
        %v2279 = vunpack.c.0.s8 %v2278
        %v2280 = vperm.slane %v2276, %v2279
        %v2281 = vrot.slane %v2271, 4
        %v2282 = vsel %vm957, %v2281, %v2269
        %v2284 = vunpack.c.l.s4 1983009808
        %v2285 = vunpack.c.0.s8 %v2284
        %v2286 = vperm.slane %v2282, %v2285
        %v2287 = vsel %vm957, %v2274, %v2263
        %v2289 = vunpack.c.l.s4 1983009808
        %v2290 = vunpack.c.0.s8 %v2289
        %v2291 = vperm.slane %v2287, %v2290
        %v2292 = vrot.slane %v2275, 4
        %v2293 = vsel %vm957, %v2292, %v2273
        %v2295 = vunpack.c.l.s4 1983009808
        %v2296 = vunpack.c.0.s8 %v2295
        %v2297 = vperm.slane %v2293, %v2296
        %v2298 = vrot.slane %v2286, 4
        %v2299 = vsel %vm957, %v2298, %v2280
        %v2300 = vrot.slane %v2280, 4
        %v2301 = vsel %vm957, %v2286, %v2300
        %v2303 = vunpack.c.l.s4 1934713408
        %v2304 = vunpack.c.0.s8 %v2303
        %v2305 = vperm.slane %v2299, %v2304
        %v2307 = vunpack.c.l.s4 1934713408
        %v2308 = vunpack.c.0.s8 %v2307
        %v2309 = vperm.slane %v2301, %v2308
        %v2310 = vrot.slane %v2297, 4
        %v2311 = vsel %vm957, %v2310, %v2291
        %v2312 = vrot.slane %v2291, 4
        %v2313 = vsel %vm957, %v2297, %v2312
        %v2315 = vunpack.c.l.s4 1934713408
        %v2316 = vunpack.c.0.s8 %v2315
        %v2317 = vperm.slane %v2311, %v2316
        %v2319 = vunpack.c.l.s4 1934713408
        %v2320 = vunpack.c.0.s8 %v2319
        %v2321 = vperm.slane %v2313, %v2320
        %v2322 = vrot.slane %v2317, 4
        %v2323 = vsel %vm957, %v2322, %v2305
        %v2324 = vrot.slane %v2305, 4
        %v2325 = vsel %vm957, %v2317, %v2324
        %v2326 = vrot.slane %v2321, 4
        %v2327 = vsel %vm957, %v2326, %v2309
        %v2328 = vrot.slane %v2309, 4
        %v2329 = vsel %vm957, %v2321, %v2328
        %2331 = vrot.lane.b32.xlu0 %v2325, 8
        %v2332 = vpop.permute.xlu0 %2331
        %2335 = vrot.lane.b32.xlu0 %v2327, 16
        %v2336 = vpop.permute.xlu0 %2335
        %2339 = vrot.lane.b32.xlu0 %v2329, 24
        %v2340 = vpop.permute.xlu0 %2339
        %v2342 = vsel %vm1319, %v2323, %v2332
        %v2343 = vsel %vm1644, %v2342, %v2336
        %v2344 = vsel %vm1646, %v2343, %v2340
        %v2345 = vpack.c.bf16 %v2344, %v1647
        %v2346 = vld [vmem:[%s640] sm:$0xf]
        %v2347 = vld [vmem:[%s640 + $0x4] sm:$0xf]
        %v2348 = vld [vmem:[%s640 + $0x8] sm:$0xf]
        %v2349 = vld [vmem:[%s640 + $0xc] sm:$0xf]
        %v2350 = vld [vmem:[%s757] sm:$0x1]
        %v2352 = vperm.slane %v2350, 0
        %v2358 = vunpack.c.l.b16 %v2346
        %v2359 = vunpack.c.l.b16 %v2347
        %v2360 = vunpack.c.l.b16 %v2348
        %v2361 = vunpack.c.l.b16 %v2349
        %v2362 = vpack.c.b16 %v2359, %v2358
        %v2363 = vpack.c.b16 %v2361, %v2360
        %v2367 = vsel %vm788, %v2345, 0
        %2369 = vmatpush.bf16.msra.mxu0 0
        %2370 = vmatpush.bf16.msra.mxu0 0
        %2371 = vmatpush.bf16.msra.mxu0 0
        %2372 = vmatpush.bf16.msra.mxu0 0
        %2373 = vmatpush.bf16.msra.mxu0 0
        %2374 = vmatpush.bf16.msra.mxu0 0
        %2375 = vmatpush.bf16.msra.mxu0 %v2363
        %2376 = vmatpush.bf16.msra.mxu0 %v2362
        %2377 = vmatmul.bf16.gmra.mxu0 %v2367
        %v2378 = vpop.f32.mrf.mxu0
        %v2379 = vadd.f32 %v2352, %v2378
        %v2380 = vpop.f32.mrf.mxu0
        %v2381 = vadd.f32 %v2352, %v2380
        %2382 = vdwg.mxu0
        %v2383 = vadd.f32 %v786, %v2379
        %v2384 = vadd.f32 %v787, %v2381
        %v2385 = vsel %vm788, %v2383, 0.0
        %2386 = vadd.xlane.f32.xlu0 %v2385
        %v2387 = vpop.xlane.xlu0 %2386
        %v2388 = vsel %vm788, %v2384, 0.0
        %2389 = vadd.xlane.f32.xlu0 %v2388
        %v2390 = vpop.xlane.xlu0 %2389
        %v2391 = vmul.f32 %v2387, %v801
        %v2392 = vmul.f32 %v2390, %v801
        %v2393 = vsub.f32 %v2383, %v2391
        %v2394 = vsub.f32 %v2384, %v2392
        %v2395 = vmul.f32 %v2393, %v2393
        %v2396 = vmul.f32 %v2394, %v2394
        %v2397 = vsel %vm788, %v2395, 0.0
        %2398 = vadd.xlane.f32.xlu0 %v2397
        %v2399 = vpop.xlane.xlu0 %2398
        %v2400 = vsel %vm788, %v2396, 0.0
        %2401 = vadd.xlane.f32.xlu0 %v2400
        %v2402 = vpop.xlane.xlu0 %2401
        %v2403 = vmul.f32 %v2399, %v801
        %v2404 = vmul.f32 %v2402, %v801
        %v2405 = vadd.f32 %v2403, 1e-05
        %v2406 = vadd.f32 %v2404, 1e-05
        %v2407 = vrsqrt.pop %v2405
        %v2408 = vmul.f32 %v2407, %v2405
        %v2409 = vmul.f32 %v2408, %v2407
        %v2410 = vmul.f32 0.5, %v2409
        %v2411 = vsub.f32 1.5, %v2410
        %v2412 = vmul.f32 %v2407, %v2411
        %vm2413 = vweird.f32 %v2405
        %vm2414 = vweird.f32 %v2407
        %vm2415 = vmor %vm2413, %vm2414
        %v2416 = vsel %vm2415, %v2407, %v2412
        %v2417 = vrsqrt.pop %v2406
        %v2418 = vmul.f32 %v2417, %v2406
        %v2419 = vmul.f32 %v2418, %v2417
        %v2420 = vmul.f32 0.5, %v2419
        %v2421 = vsub.f32 1.5, %v2420
        %v2422 = vmul.f32 %v2417, %v2421
        %vm2423 = vweird.f32 %v2406
        %vm2424 = vweird.f32 %v2417
        %vm2425 = vmor %vm2423, %vm2424
        %v2426 = vsel %vm2425, %v2417, %v2422
        %v2427 = vmul.f32 %v2393, %v2416
        %v2428 = vmul.f32 %v2394, %v2426
        %v2429 = vld [vmem:[%s760] sm:$0x1]
        %v2431 = vperm.slane %v2429, 0
        %v2433 = vmul.f32 %v2427, %v2431
        %v2434 = vmul.f32 %v2428, %v2431
        %v2435 = vld [vmem:[%s763] sm:$0x1]
        %v2437 = vperm.slane %v2435, 0
        %v2439 = vadd.f32 %v2433, %v2437
        %v2440 = vadd.f32 %v2434, %v2437
        %v2441 = vpack.c.bf16 %v2440, %v2439
        %v2442 = vld [vmem:[%s650] sm:$0xf]
        %v2443 = vld [vmem:[%s650 + $0x4] sm:$0xf]
        %v2444 = vld [vmem:[%s650 + $0x8] sm:$0xf]
        %v2445 = vld [vmem:[%s650 + $0xc] sm:$0xf]
        %v2446 = vld [vmem:[%s766] sm:$0x1]
        %v2448 = vperm.slane %v2446, 0
        %v2454 = vunpack.c.l.b16 %v2442
        %v2455 = vunpack.c.l.b16 %v2443
        %v2456 = vunpack.c.l.b16 %v2444
        %v2457 = vunpack.c.l.b16 %v2445
        %v2458 = vpack.c.b16 %v2455, %v2454
        %v2459 = vpack.c.b16 %v2457, %v2456
        %v2463 = vsel %vm788, %v2441, 0
        %2465 = vmatpush.bf16.msra.mxu0 0
        %2466 = vmatpush.bf16.msra.mxu0 0
        %2467 = vmatpush.bf16.msra.mxu0 0
        %2468 = vmatpush.bf16.msra.mxu0 0
        %2469 = vmatpush.bf16.msra.mxu0 0
        %2470 = vmatpush.bf16.msra.mxu0 0
        %2471 = vmatpush.bf16.msra.mxu0 %v2459
        %2472 = vmatpush.bf16.msra.mxu0 %v2458
        %2473 = vmatmul.bf16.gmra.mxu0 %v2463
        %v2474 = vpop.f32.mrf.mxu0
        %v2475 = vadd.f32 %v2448, %v2474
        %v2476 = vpop.f32.mrf.mxu0
        %v2477 = vadd.f32 %v2448, %v2476
        %2478 = vdwg.mxu0
        %v2479 = vmax.f32 %v2475, 0.0
        %v2480 = vmax.f32 %v2477, 0.0
        %v2481 = vpack.c.bf16 %v2480, %v2479
        %v2482 = vld [vmem:[%s771] sm:$0xf]
        %v2483 = vld [vmem:[%s771 + $0x4] sm:$0xf]
        %v2484 = vld [vmem:[%s771 + $0x8] sm:$0xf]
        %v2485 = vld [vmem:[%s771 + $0xc] sm:$0xf]
        %v2486 = vld [vmem:[%s771 + $0x10] sm:$0xf]
        %v2487 = vld [vmem:[%s771 + $0x14] sm:$0xf]
        %v2488 = vld [vmem:[%s771 + $0x18] sm:$0xf]
        %v2489 = vld [vmem:[%s771 + $0x1c] sm:$0xf]
        %v2490 = vld [vmem:[%s774] sm:$0x1]
        %v2492 = vperm.slane %v2490, 0
        %v2502 = vunpack.c.l.b16 %v2482
        %v2503 = vunpack.c.l.b16 %v2483
        %v2504 = vunpack.c.l.b16 %v2484
        %v2505 = vunpack.c.l.b16 %v2485
        %v2506 = vunpack.c.l.b16 %v2486
        %v2507 = vunpack.c.l.b16 %v2487
        %v2508 = vunpack.c.l.b16 %v2488
        %v2509 = vunpack.c.l.b16 %v2489
        %v2510 = vpack.c.b16 %v2503, %v2502
        %v2511 = vpack.c.b16 %v2505, %v2504
        %v2512 = vpack.c.b16 %v2507, %v2506
        %v2513 = vpack.c.b16 %v2509, %v2508
        %vm2518 = vcmask 523264
        %v2520 = vsel %vm2518, %v2481, 0
        %2522 = vmatpush.bf16.msra.mxu0 0
        %2523 = vmatpush.bf16.msra.mxu0 0
        %2524 = vmatpush.bf16.msra.mxu0 0
        %2525 = vmatpush.bf16.msra.mxu0 0
        %2526 = vmatpush.bf16.msra.mxu0 %v2513
        %2527 = vmatpush.bf16.msra.mxu0 %v2512
        %2528 = vmatpush.bf16.msra.mxu0 %v2511
        %2529 = vmatpush.bf16.msra.mxu0 %v2510
        %2530 = vmatmul.bf16.gmra.mxu0 %v2520
        %v2531 = vpop.f32.mrf.mxu0
        %v2532 = vadd.f32 %v2492, %v2531
        %v2533 = vpop.f32.mrf.mxu0
        %v2534 = vadd.f32 %v2492, %v2533
        %2535 = vdwg.mxu0
        %v2536 = vadd.f32 %v2383, %v2532
        %v2537 = vadd.f32 %v2384, %v2534
        %2538 = vst.msk [vmem:[#allocation11] sm:$0xff] %vm788, %v2536
        %2539 = vst.msk [vmem:[#allocation11 + $0x8] sm:$0xff] %vm788, %v2537
        // Predicated region
        $region101: #{tpu_custom_call.1} parent=75 // pred_check
          %p2540 = pneg %p427
        $region102: #{tpu_custom_call.1} parent=75 // pred_check_branch
          %2542 = sbr.rel (%p2540) target = $region104
        $region103: #{tpu_custom_call.1} parent=75 // pred_region
          %s2543 = smul.u32 2, %s37
          %2545 = vsyncadd [#allocation4], 0
          %s2546 = smul.addr %s2543, 8
          %s2547 = scalar_lea.hbm %s14, %s2546
          %s2548 = sshll.u32 [#allocation11], 4
          %s2549 = int_to_ptr.vmem [resolvable:$true] %s2548
          %s2550 = sshll.u32 %s2547, 4
          %s2551 = int_to_ptr.hbm [resolvable:$true] %s2550
          %2556 = dma.vmem_to_hbm [thread:$0]  %s2549, 256, %s2551, [#allocation4], 128, 128, 8
        $region104: #{tpu_custom_call.1} parent=75 // pred_fallthru
          _
        // Predicated region
        $region105: #{tpu_custom_call.1} parent=75 // pred_check
          %p2557 = pneg %p427
        $region106: #{tpu_custom_call.1} parent=75 // pred_check_branch
          %2559 = sbr.rel (%p2557) target = $region108
        $region107: #{tpu_custom_call.1} parent=75 // pred_region
          %2561 = dma.done [#allocation4], 256
        $region108: #{tpu_custom_call.1} parent=75 // pred_fallthru
          _
      $region76: #{tpu_custom_call.1} parent=5 // pred_fallthru
        _
      %p2562 = scmp.le.s32.totalorder 2, %s28
      // Predicated region
      $region109: #{tpu_custom_call.1} parent=5 // pred_check
        %p2563 = pneg %p2562
      $region110: #{tpu_custom_call.1} parent=5 // pred_check_branch
        %2565 = sbr.rel (%p2563) target = $region112
      $region111: #{tpu_custom_call.1} parent=5 // pred_region
        %s2566 = ssub.s32 %s28, 2
      $region112: #{tpu_custom_call.1} parent=5 // pred_fallthru
        _
    $region6: #{tpu_custom_call.1} parent=1 // loop_footer
      %s32 = sadd.s32 1, %s28
    $region7: #{tpu_custom_call.1} parent=1 // loop_footer_branch
      %27 = sbr.rel target = $region3
    $region8: #{tpu_custom_call.1} parent=1 // loop_exit
      _
    %2567 = vsyncpa [#allocation3], 1
    %s2568 = scalar_lea.sflag [#allocation3], 1
    %2569 = vsyncpa %s2568, 1
    %2570 = vsyncpa [#allocation6], 1
    %s2571 = scalar_lea.sflag [#allocation6], 1
    %2572 = vsyncpa %s2571, 1
    %2573 = vsyncpa [#allocation9], 1
    %s2574 = scalar_lea.sflag [#allocation9], 1
    %2575 = vsyncpa %s2574, 1
    %2576 = vsyncpa [#allocation4], 1
    %s2577 = scalar_lea.sflag [#allocation4], 1
    %2578 = vsyncpa %s2577, 1

</llo_original>
